<compile_context>
chip_gen: v7x
topology: tpu7x:2x2x1
jax: 0.10.0
libtpu: 0.0.40
codegen_flags: <defaults>
</compile_context>

<pallas_src>
import functools

import numpy as np
import jax
import jax.numpy as jnp
from jax import lax
from jax.experimental import pallas as pl
from jax.experimental.pallas import tpu as pltpu

_EPS = 1e-5


# ----------------------------------------------------------------------------
# host-side glue
# ----------------------------------------------------------------------------
def adaptive_avg_pool_matrix(in_size, out_size):
    """Row i averages x[start:end] with PyTorch adaptive_avg_pool semantics."""
    A = np.zeros((out_size, in_size), np.float32)
    for i in range(out_size):
        start = (i * in_size) // out_size
        end = -((-(i + 1) * in_size) // out_size)  # ceil((i+1)*in/out)
        A[i, start:end] = 1.0 / (end - start)
    return A


def _fold_bn(bn):
    gamma, beta, mean, var = bn
    scale = gamma / jnp.sqrt(var + _EPS)
    shift = beta - mean * scale
    return scale, shift


def _prepare_kernel_params(P):
    """Fold BN into conv weights; build fused block-diagonal tap weights."""
    hidden = P['w1'].shape[0]
    cq = hidden // 4

    s1, b1 = _fold_bn(P['bn1'])
    w1 = P['w1'][:, :, 0, 0] * s1[:, None]                 # (hidden, Cin)

    s3, b3 = _fold_bn(P['bn3'])
    w3 = P['w3'][:, :, 0, 0] * s3[:, None]                 # (Cout, hidden)

    sh, bh = _fold_bn(P['bn2h'])
    sv, bv = _fold_bn(P['bn2v'])
    sh1, bh1 = _fold_bn(P['bn2h1'])
    sv1, bv1 = _fold_bn(P['bn2v1'])
    s2 = jnp.concatenate([sh, sv, sh1, sv1])
    b2 = jnp.concatenate([bh, bv, bh1, bv1])

    def blockdiag(blocks):                                  # {quarter: (out,in)}
        W = jnp.zeros((hidden, hidden), jnp.float32)
        for qi, blk in blocks.items():
            W = W.at[qi * cq:(qi + 1) * cq, qi * cq:(qi + 1) * cq].set(blk)
        return W

    wh, wv, wh1, wv1 = P['wh'], P['wv'], P['wh1'], P['wv1']
    # tap t of a 3-wide kernel reads the input at spatial offset (t - 1)
    Wc = blockdiag({0: wh[:, :, 0, 1], 1: wv[:, :, 1, 0],
                    2: wh1[:, :, 0, 1], 3: wv1[:, :, 1, 0]})   # centre taps
    Wl = blockdiag({0: wh[:, :, 0, 0], 2: wh1[:, :, 0, 0]})    # (r, c-1)
    Wr = blockdiag({0: wh[:, :, 0, 2], 2: wh1[:, :, 0, 2]})    # (r, c+1)
    Wu = blockdiag({1: wv[:, :, 0, 0], 3: wv1[:, :, 0, 0]})    # (r-1, c)
    Wd = blockdiag({1: wv[:, :, 2, 0], 3: wv1[:, :, 2, 0]})    # (r+1, c)
    wq = jnp.concatenate([Wc, Wl, Wr, Wu, Wd], axis=1) * s2[:, None]  # (h, 5h)

    bf = lambda a: a.astype(jnp.bfloat16)
    col = lambda a: a[:, None].astype(jnp.float32)
    return bf(w1), col(b1), bf(wq), col(b2), bf(w3), col(b3)


# ----------------------------------------------------------------------------
# Pallas kernel: one batch group per grid step (grid axis is "parallel")
# ----------------------------------------------------------------------------
def skip_block_kernel(x_ref, gt_ref, mask_ref, w1_ref, b1_ref, wq_ref, b2_ref,
                      w3_ref, b3_ref, *rest, S, stride, identity):
    if stride == 2:
        dsub_ref, out_ref, cat_ref = rest
    else:
        out_ref, cat_ref = rest

    hidden = w1_ref.shape[0]
    Mg = gt_ref.shape[1]                                     # batch_tile*S*S

    # adaptive average pool: ONE block-diagonal MXU matmul for the whole group,
    # kept f32 so the identity residual carries full input precision.
    pooled = jnp.dot(x_ref[0], gt_ref[...],
                     preferred_element_type=jnp.float32)     # (Cin, Mg)

    # conv1 (1x1, BN folded) + relu6
    h = jnp.dot(w1_ref[...], pooled.astype(jnp.bfloat16),
                preferred_element_type=jnp.float32)          # (hidden, Mg)
    h = jnp.clip(h + b1_ref[...], 0.0, 6.0)

    # centre + 4 spatial taps written into the preallocated (5*hidden, Mg)
    # bf16 scratch at static offsets (no concatenate copy).  Taps are XLU lane
    # rotations; boundary masks are host-precomputed 0/1 operands applied in
    # f32 (v5e-friendly) and cast to bf16 once on store.
    masks = mask_ref[...]                                    # (4, Mg) f32
    cat_ref[0:hidden, :] = h.astype(jnp.bfloat16)
    shifts = (1, Mg - 1, S, Mg - S)                          # left,right,up,down
    for t in range(4):
        tap = pltpu.roll(h, shifts[t], 1) * masks[t:t + 1, :]
        cat_ref[(t + 1) * hidden:(t + 2) * hidden, :] = tap.astype(jnp.bfloat16)

    # all four quarter (1,3)/(3,1) convs + BN in ONE fused K=5*hidden matmul
    q = jnp.dot(wq_ref[...], cat_ref[...],
                preferred_element_type=jnp.float32)          # (hidden, Mg)
    q = jnp.clip(q + b2_ref[...], 0.0, 6.0)

    # conv3 (1x1, BN folded) + optional identity skip
    y = jnp.dot(w3_ref[...], q.astype(jnp.bfloat16),
                preferred_element_type=jnp.float32)          # (Cout, Mg)
    y = y + b3_ref[...]
    if identity:
        y = y + pooled
    if stride == 2:
        # column subsample moved AFTER conv3 (relu6 / 1x1 conv commute with
        # column selection); f32 0/1 selection matmul is exact.
        y = jnp.dot(y, dsub_ref[...], preferred_element_type=jnp.float32)
    out_ref[0] = y.astype(out_ref.dtype)


# ----------------------------------------------------------------------------
# wrapper
# ----------------------------------------------------------------------------
def skip_block_quartern(x_nchw, P, *, size, stride, batch_tile=None):
    assert stride in (1, 2)
    N, Cin, H, W = x_nchw.shape
    hidden = P['w1'].shape[0]
    assert hidden % 4 == 0
    Cout = P['w3'].shape[0]
    S = size
    So = (S - 1) // stride + 1
    identity = (stride == 1 and Cin == Cout)

    # pick a batch group so each grid step has >= ~256 lanes (v6e MXU) while
    # leaving several grid steps for megacore/v7x parallelism.
    if batch_tile is None:
        batch_tile = max(1, min(N, -(-256 // (S * S))))
        while N % batch_tile:
            batch_tile -= 1
    assert N % batch_tile == 0
    G = N // batch_tile
    Mg = batch_tile * S * S
    Mog = batch_tile * So * So

    # pooling matrix, block-diagonal over the images of one group, so pooling
    # is one matmul that lands lane-dense as (Cin, Mg) -- no in-kernel concat.
    A = np.kron(adaptive_avg_pool_matrix(H, S),
                adaptive_avg_pool_matrix(W, S)).T            # (H*W, S*S)
    gt_np = np.zeros((batch_tile * H * W, Mg), np.float32)
    for b in range(batch_tile):
        gt_np[b * H * W:(b + 1) * H * W, b * S * S:(b + 1) * S * S] = A
    gt = jnp.asarray(gt_np)

    # host-side 0/1 boundary masks for the four taps; lane l = b*S*S + r*S + c
    lane = np.arange(Mg)
    c = lane % S
    r = (lane // S) % S
    masks = jnp.asarray(np.stack([c != 0, c != S - 1,
                                  r != 0, r != S - 1]).astype(np.float32))

    params = _prepare_kernel_params(P)

    # (N, Cin, H, W) -> (G, Cin, batch_tile*H*W): lane-dense per-group slab
    x = (x_nchw.reshape(G, batch_tile, Cin, H * W)
               .transpose(0, 2, 1, 3)
               .reshape(G, Cin, batch_tile * H * W)
               .astype(jnp.float32))

    operands = [x, gt, masks, *params]
    in_specs = [pl.BlockSpec((1, Cin, batch_tile * H * W),
                             lambda g: (g, 0, 0))]
    for a in operands[1:]:
        in_specs.append(pl.BlockSpec(a.shape, lambda g, nd=a.ndim: (0,) * nd))

    if stride == 2:
        dsub_np = np.zeros((Mg, Mog), np.float32)            # block-diag/group
        for b in range(batch_tile):
            for ro in range(So):
                for co in range(So):
                    dsub_np[b * S * S + 2 * ro * S + 2 * co,
                            b * So * So + ro * So + co] = 1.0
        dsub = jnp.asarray(dsub_np)
        operands.append(dsub)
        in_specs.append(pl.BlockSpec(dsub.shape, lambda g: (0, 0)))

    kernel = functools.partial(skip_block_kernel, S=S, stride=stride,
                               identity=identity)

    flops = 2 * G * (Cin * (batch_tile * H * W) * Mg        # pooling
                     + hidden * Cin * Mg                    # conv1
                     + hidden * 5 * hidden * Mg             # fused quarter conv
                     + Cout * hidden * Mg)                  # conv3
    if stride == 2:
        flops += 2 * G * Cout * Mg * Mog
    bytes_accessed = (sum(int(np.prod(a.shape)) * a.dtype.itemsize
                          for a in operands)
                      + G * Cout * Mog * 4)

    out = pl.pallas_call(
        kernel,
        out_shape=jax.ShapeDtypeStruct((G, Cout, Mog), jnp.float32),
        grid_spec=pltpu.PrefetchScalarGridSpec(
            num_scalar_prefetch=0,
            grid=(G,),
            in_specs=in_specs,
            out_specs=pl.BlockSpec((1, Cout, Mog), lambda g: (g, 0, 0)),
            scratch_shapes=[pltpu.VMEM((5 * hidden, Mg), jnp.bfloat16)]),
        compiler_params=pltpu.CompilerParams(
            dimension_semantics=("parallel",)),
        cost_estimate=pl.CostEstimate(flops=int(flops), transcendentals=0,
                                      bytes_accessed=int(bytes_accessed)),
    )(*operands)

    # (G, Cout, batch_tile*So*So) -> (N, Cout, So, So)
    out = out.reshape(G, Cout, batch_tile, So, So)
    return jnp.transpose(out, (0, 2, 1, 3, 4)).reshape(N, Cout, So, So)


# ----------------------------------------------------------------------------
# deterministic parameter init (PyTorch OIHW shapes) + pure-JAX reference
# ----------------------------------------------------------------------------
def init_params(key, inp, hidden, outc):
    cq = hidden // 4
    keys = iter(jax.random.split(key, 30))

    def conv_w(shape):
        return 0.1 * jax.random.normal(next(keys), shape, jnp.float32)

    def bn(c):
        gamma = 1.0 + 0.1 * jax.random.normal(next(keys), (c,), jnp.float32)
        beta = 0.05 * jax.random.normal(next(keys), (c,), jnp.float32)
        mean = 0.1 * jax.random.normal(next(keys), (c,), jnp.float32)
        var = jax.random.uniform(next(keys), (c,), jnp.float32, 0.5, 1.5)
        return (gamma, beta, mean, var)

    return dict(
        w1=conv_w((hidden, inp, 1, 1)), bn1=bn(hidden),
        wh=conv_w((cq, cq, 1, 3)), bn2h=bn(cq),
        wv=conv_w((cq, cq, 3, 1)), bn2v=bn(cq),
        wh1=conv_w((cq, cq, 1, 3)), bn2h1=bn(cq),
        wv1=conv_w((cq, cq, 3, 1)), bn2v1=bn(cq),
        w3=conv_w((outc, hidden, 1, 1)), bn3=bn(outc),
    )


def _bn_apply(x_nhwc, bn):
    gamma, beta, mean, var = bn
    return (x_nhwc - mean) / jnp.sqrt(var + _EPS) * gamma + beta


def _conv_nhwc(x, w_oihw, stride, padding):
    w_hwio = jnp.transpose(w_oihw, (2, 3, 1, 0))
    return lax.conv_general_dilated(
        x, w_hwio, (stride, stride), padding,
        dimension_numbers=('NHWC', 'HWIO', 'NHWC'),
        precision=lax.Precision.HIGHEST)


def reference_forward(x_nchw, P, size, stride):
    x = jnp.transpose(x_nchw, (0, 2, 3, 1))
    N, H, W, C = x.shape
    kh, kw = H // size, W // size                    # divisible case in the demo
    pooled = x.reshape(N, size, kh, size, kw, C).mean(axis=(2, 4))

    h = jnp.clip(_bn_apply(_conv_nhwc(pooled, P['w1'], 1, ((0, 0), (0, 0))),
                           P['bn1']), 0.0, 6.0)
    cq = h.shape[-1] // 4
    chunks = [h[..., i * cq:(i + 1) * cq] for i in range(4)]
    specs = [('wh', 'bn2h', ((0, 0), (1, 1))), ('wv', 'bn2v', ((1, 1), (0, 0))),
             ('wh1', 'bn2h1', ((0, 0), (1, 1))), ('wv1', 'bn2v1', ((1, 1), (0, 0)))]
    outs = []
    for ch, (wk, bk, pad) in zip(chunks, specs):
        outs.append(jnp.clip(_bn_apply(_conv_nhwc(ch, P[wk], stride, pad), P[bk]),
                             0.0, 6.0))
    cat = jnp.concatenate(outs, axis=-1)
    y = _bn_apply(_conv_nhwc(cat, P['w3'], 1, ((0, 0), (0, 0))), P['bn3'])
    if stride == 1 and x_nchw.shape[1] == y.shape[-1]:
        y = y + pooled
    return jnp.transpose(y, (0, 3, 1, 2))


# ----------------------------------------------------------------------------
if __name__ == "__main__":
    key = jax.random.PRNGKey(0)
    k_x, k_p = jax.random.split(key)

    # batch 8 -> batch_tile 4 -> grid of 2 "parallel" steps, 256 lanes/step.
    N, inp, hidden, outc = 8, 8, 16, 8
    H = W = 16
    size = 8

    x = jax.random.normal(k_x, (N, inp, H, W), jnp.float32)
    P = init_params(k_p, inp, hidden, outc)

    for stride in (1, 2):
        y_kernel = jax.block_until_ready(
            skip_block_quartern(x, P, size=size, stride=stride))
        y_ref = reference_forward(x, P, size, stride)
        assert y_kernel.shape == y_ref.shape, (y_kernel.shape, y_ref.shape)
        # bf16 MXU operands with f32 accumulation -> ~1e-2 error budget
        np.testing.assert_allclose(np.asarray(y_kernel), np.asarray(y_ref),
                                   rtol=1e-2, atol=1e-2)
    print("KERNEL_OK")
</pallas_src>

<mosaic_0001>
module attributes {stable_mosaic.version = 11 : i64} {
  func.func @skip_block_kernel(%arg0: i32, %arg1: memref<1x8x1024xf32, #tpu.memory_space<vmem>>, %arg2: memref<1024x256xf32, #tpu.memory_space<vmem>>, %arg3: memref<4x256xf32, #tpu.memory_space<vmem>>, %arg4: memref<16x8xbf16, #tpu.memory_space<vmem>>, %arg5: memref<16x1xf32, #tpu.memory_space<vmem>>, %arg6: memref<16x80xbf16, #tpu.memory_space<vmem>>, %arg7: memref<16x1xf32, #tpu.memory_space<vmem>>, %arg8: memref<8x16xbf16, #tpu.memory_space<vmem>>, %arg9: memref<8x1xf32, #tpu.memory_space<vmem>>, %arg10: memref<1x8x256xf32, #tpu.memory_space<vmem>>, %arg11: memref<80x256xbf16, #tpu.memory_space<vmem>>) attributes {dimension_semantics = [#tpu.dimension_semantics<parallel>], iteration_bounds = array<i64: 2>, scalar_prefetch = 0 : i64, scratch_operands = 1 : i64, tpu.core_type = #tpu.core_type<tc>, window_params = [{transform_indices = @transform_0, window_bounds = array<i64: 1, 8, 1024>}, {pipeline_mode = #tpu.pipeline_mode<synchronous>, transform_indices = @transform_1, window_bounds = array<i64: 1024, 256>}, {pipeline_mode = #tpu.pipeline_mode<synchronous>, transform_indices = @transform_2, window_bounds = array<i64: 4, 256>}, {pipeline_mode = #tpu.pipeline_mode<synchronous>, transform_indices = @transform_3, window_bounds = array<i64: 16, 8>}, {pipeline_mode = #tpu.pipeline_mode<synchronous>, transform_indices = @transform_4, window_bounds = array<i64: 16, 1>}, {pipeline_mode = #tpu.pipeline_mode<synchronous>, transform_indices = @transform_5, window_bounds = array<i64: 16, 80>}, {pipeline_mode = #tpu.pipeline_mode<synchronous>, transform_indices = @transform_6, window_bounds = array<i64: 16, 1>}, {pipeline_mode = #tpu.pipeline_mode<synchronous>, transform_indices = @transform_7, window_bounds = array<i64: 8, 16>}, {pipeline_mode = #tpu.pipeline_mode<synchronous>, transform_indices = @transform_8, window_bounds = array<i64: 8, 1>}, {transform_indices = @transform_9, window_bounds = array<i64: 1, 8, 256>}]} {
    %c0 = arith.constant 0 : index
    %c0_0 = arith.constant 0 : index
    %c0_1 = arith.constant 0 : index
    %0 = vector.load %arg1[%c0, %c0_0, %c0_1] : memref<1x8x1024xf32, #tpu.memory_space<vmem>>, vector<1x8x1024xf32>
    %1 = vector.shape_cast %0 : vector<1x8x1024xf32> to vector<8x1024xf32>
    %c0_2 = arith.constant 0 : index
    %c0_3 = arith.constant 0 : index
    %2 = vector.load %arg2[%c0_2, %c0_3] : memref<1024x256xf32, #tpu.memory_space<vmem>>, vector<1024x256xf32>
    %cst = arith.constant dense<0.000000e+00> : vector<8x256xf32>
    %3 = tpu.matmul %1, %2, %cst {dimension_numbers = #tpu.dot_dimension_numbers<[1], [0], [0], [1], [0, 0, 1, 1], [], []>} : vector<8x1024xf32>, vector<1024x256xf32>, vector<8x256xf32> -> vector<8x256xf32>
    %c0_4 = arith.constant 0 : index
    %c0_5 = arith.constant 0 : index
    %4 = vector.load %arg4[%c0_4, %c0_5] : memref<16x8xbf16, #tpu.memory_space<vmem>>, vector<16x8xbf16>
    %5 = arith.truncf %3 : vector<8x256xf32> to vector<8x256xbf16>
    %cst_6 = arith.constant dense<0.000000e+00> : vector<16x256xf32>
    %6 = tpu.matmul %4, %5, %cst_6 {dimension_numbers = #tpu.dot_dimension_numbers<[1], [0], [0], [1], [0, 0, 1, 1], [], []>} : vector<16x8xbf16>, vector<8x256xbf16>, vector<16x256xf32> -> vector<16x256xf32>
    %c0_7 = arith.constant 0 : index
    %c0_8 = arith.constant 0 : index
    %7 = vector.load %arg5[%c0_7, %c0_8] : memref<16x1xf32, #tpu.memory_space<vmem>>, vector<16x1xf32>
    %8 = vector.broadcast %7 : vector<16x1xf32> to vector<16x256xf32>
    %9 = arith.addf %6, %8 : vector<16x256xf32>
    %cst_9 = arith.constant 0.000000e+00 : f32
    %cst_10 = arith.constant 6.000000e+00 : f32
    %10 = vector.broadcast %cst_9 : f32 to vector<16x256xf32>
    %11 = arith.maximumf %10, %9 : vector<16x256xf32>
    %12 = vector.broadcast %cst_10 : f32 to vector<16x256xf32>
    %13 = arith.minimumf %12, %11 : vector<16x256xf32>
    %c0_11 = arith.constant 0 : index
    %c0_12 = arith.constant 0 : index
    %14 = vector.load %arg3[%c0_11, %c0_12] : memref<4x256xf32, #tpu.memory_space<vmem>>, vector<4x256xf32>
    %15 = arith.truncf %13 : vector<16x256xf32> to vector<16x256xbf16>
    %c0_13 = arith.constant 0 : index
    %c0_14 = arith.constant 0 : index
    %16 = vector.load %arg11[%c0_13, %c0_14] : memref<80x256xbf16, #tpu.memory_space<vmem>>, vector<16x256xbf16>
    tpu.vector_store %arg11[%c0_13, %c0_14], %15 {strides = array<i32>} : memref<80x256xbf16, #tpu.memory_space<vmem>>, vector<16x256xbf16>,
    %c1_i32 = arith.constant 1 : i32
    %17 = tpu.dynamic_rotate %13 by %c1_i32 dim 1 : vector<16x256xf32>, i32 -> vector<16x256xf32>
    %18 = vector.extract_strided_slice %14 {offsets = [0, 0], sizes = [1, 256], strides = [1, 1]} : vector<4x256xf32> to vector<1x256xf32>
    %19 = vector.broadcast %18 : vector<1x256xf32> to vector<16x256xf32>
    %20 = arith.mulf %17, %19 : vector<16x256xf32>
    %21 = arith.truncf %20 : vector<16x256xf32> to vector<16x256xbf16>
    %c16 = arith.constant 16 : index
    %c0_15 = arith.constant 0 : index
    %22 = vector.load %arg11[%c16, %c0_15] : memref<80x256xbf16, #tpu.memory_space<vmem>>, vector<16x256xbf16>
    tpu.vector_store %arg11[%c16, %c0_15], %21 {strides = array<i32>} : memref<80x256xbf16, #tpu.memory_space<vmem>>, vector<16x256xbf16>,
    %c255_i32 = arith.constant 255 : i32
    %23 = tpu.dynamic_rotate %13 by %c255_i32 dim 1 : vector<16x256xf32>, i32 -> vector<16x256xf32>
    %24 = vector.extract_strided_slice %14 {offsets = [1, 0], sizes = [1, 256], strides = [1, 1]} : vector<4x256xf32> to vector<1x256xf32>
    %25 = vector.broadcast %24 : vector<1x256xf32> to vector<16x256xf32>
    %26 = arith.mulf %23, %25 : vector<16x256xf32>
    %27 = arith.truncf %26 : vector<16x256xf32> to vector<16x256xbf16>
    %c32 = arith.constant 32 : index
    %c0_16 = arith.constant 0 : index
    %28 = vector.load %arg11[%c32, %c0_16] : memref<80x256xbf16, #tpu.memory_space<vmem>>, vector<16x256xbf16>
    tpu.vector_store %arg11[%c32, %c0_16], %27 {strides = array<i32>} : memref<80x256xbf16, #tpu.memory_space<vmem>>, vector<16x256xbf16>,
    %c8_i32 = arith.constant 8 : i32
    %29 = tpu.dynamic_rotate %13 by %c8_i32 dim 1 : vector<16x256xf32>, i32 -> vector<16x256xf32>
    %30 = vector.extract_strided_slice %14 {offsets = [2, 0], sizes = [1, 256], strides = [1, 1]} : vector<4x256xf32> to vector<1x256xf32>
    %31 = vector.broadcast %30 : vector<1x256xf32> to vector<16x256xf32>
    %32 = arith.mulf %29, %31 : vector<16x256xf32>
    %33 = arith.truncf %32 : vector<16x256xf32> to vector<16x256xbf16>
    %c48 = arith.constant 48 : index
    %c0_17 = arith.constant 0 : index
    %34 = vector.load %arg11[%c48, %c0_17] : memref<80x256xbf16, #tpu.memory_space<vmem>>, vector<16x256xbf16>
    tpu.vector_store %arg11[%c48, %c0_17], %33 {strides = array<i32>} : memref<80x256xbf16, #tpu.memory_space<vmem>>, vector<16x256xbf16>,
    %c248_i32 = arith.constant 248 : i32
    %35 = tpu.dynamic_rotate %13 by %c248_i32 dim 1 : vector<16x256xf32>, i32 -> vector<16x256xf32>
    %36 = vector.extract_strided_slice %14 {offsets = [3, 0], sizes = [1, 256], strides = [1, 1]} : vector<4x256xf32> to vector<1x256xf32>
    %37 = vector.broadcast %36 : vector<1x256xf32> to vector<16x256xf32>
    %38 = arith.mulf %35, %37 : vector<16x256xf32>
    %39 = arith.truncf %38 : vector<16x256xf32> to vector<16x256xbf16>
    %c64 = arith.constant 64 : index
    %c0_18 = arith.constant 0 : index
    %40 = vector.load %arg11[%c64, %c0_18] : memref<80x256xbf16, #tpu.memory_space<vmem>>, vector<16x256xbf16>
    tpu.vector_store %arg11[%c64, %c0_18], %39 {strides = array<i32>} : memref<80x256xbf16, #tpu.memory_space<vmem>>, vector<16x256xbf16>,
    %c0_19 = arith.constant 0 : index
    %c0_20 = arith.constant 0 : index
    %41 = vector.load %arg6[%c0_19, %c0_20] : memref<16x80xbf16, #tpu.memory_space<vmem>>, vector<16x80xbf16>
    %c0_21 = arith.constant 0 : index
    %c0_22 = arith.constant 0 : index
    %42 = vector.load %arg11[%c0_21, %c0_22] : memref<80x256xbf16, #tpu.memory_space<vmem>>, vector<80x256xbf16>
    %cst_23 = arith.constant dense<0.000000e+00> : vector<16x256xf32>
    %43 = tpu.matmul %41, %42, %cst_23 {dimension_numbers = #tpu.dot_dimension_numbers<[1], [0], [0], [1], [0, 0, 1, 1], [], []>} : vector<16x80xbf16>, vector<80x256xbf16>, vector<16x256xf32> -> vector<16x256xf32>
    %c0_24 = arith.constant 0 : index
    %c0_25 = arith.constant 0 : index
    %44 = vector.load %arg7[%c0_24, %c0_25] : memref<16x1xf32, #tpu.memory_space<vmem>>, vector<16x1xf32>
    %45 = vector.broadcast %44 : vector<16x1xf32> to vector<16x256xf32>
    %46 = arith.addf %43, %45 : vector<16x256xf32>
    %cst_26 = arith.constant 0.000000e+00 : f32
    %cst_27 = arith.constant 6.000000e+00 : f32
    %47 = vector.broadcast %cst_26 : f32 to vector<16x256xf32>
    %48 = arith.maximumf %47, %46 : vector<16x256xf32>
    %49 = vector.broadcast %cst_27 : f32 to vector<16x256xf32>
    %50 = arith.minimumf %49, %48 : vector<16x256xf32>
    %c0_28 = arith.constant 0 : index
    %c0_29 = arith.constant 0 : index
    %51 = vector.load %arg8[%c0_28, %c0_29] : memref<8x16xbf16, #tpu.memory_space<vmem>>, vector<8x16xbf16>
    %52 = arith.truncf %50 : vector<16x256xf32> to vector<16x256xbf16>
    %cst_30 = arith.constant dense<0.000000e+00> : vector<8x256xf32>
    %53 = tpu.matmul %51, %52, %cst_30 {dimension_numbers = #tpu.dot_dimension_numbers<[1], [0], [0], [1], [0, 0, 1, 1], [], []>} : vector<8x16xbf16>, vector<16x256xbf16>, vector<8x256xf32> -> vector<8x256xf32>
    %c0_31 = arith.constant 0 : index
    %c0_32 = arith.constant 0 : index
    %54 = vector.load %arg9[%c0_31, %c0_32] : memref<8x1xf32, #tpu.memory_space<vmem>>, vector<8x1xf32>
    %55 = vector.broadcast %54 : vector<8x1xf32> to vector<8x256xf32>
    %56 = arith.addf %53, %55 : vector<8x256xf32>
    %57 = arith.addf %56, %3 : vector<8x256xf32>
    %c0_33 = arith.constant 0 : index
    %c0_34 = arith.constant 0 : index
    %c0_35 = arith.constant 0 : index
    %58 = vector.load %arg10[%c0_33, %c0_34, %c0_35] : memref<1x8x256xf32, #tpu.memory_space<vmem>>, vector<1x8x256xf32>
    %59 = vector.shape_cast %58 : vector<1x8x256xf32> to vector<8x256xf32>
    %60 = vector.shape_cast %57 : vector<8x256xf32> to vector<1x8x256xf32>
    tpu.vector_store %arg10[%c0_33, %c0_34, %c0_35], %60 {strides = array<i32>} : memref<1x8x256xf32, #tpu.memory_space<vmem>>, vector<1x8x256xf32>,
    return
  }
  func.func @transform_0(%arg0: i32) -> (i32, i32, i32) {
    %c0_i32 = arith.constant 0 : i32
    %c0_i32_0 = arith.constant 0 : i32
    %c0_i32_1 = arith.constant 0 : i32
    return %arg0, %c0_i32, %c0_i32_0 : i32, i32, i32
  }
  func.func @transform_1(%arg0: i32) -> (i32, i32) {
    %c0_i32 = arith.constant 0 : i32
    %c0_i32_0 = arith.constant 0 : i32
    %c0_i32_1 = arith.constant 0 : i32
    return %c0_i32, %c0_i32_0 : i32, i32
  }
  func.func @transform_2(%arg0: i32) -> (i32, i32) {
    %c0_i32 = arith.constant 0 : i32
    %c0_i32_0 = arith.constant 0 : i32
    %c0_i32_1 = arith.constant 0 : i32
    return %c0_i32, %c0_i32_0 : i32, i32
  }
  func.func @transform_3(%arg0: i32) -> (i32, i32) {
    %c0_i32 = arith.constant 0 : i32
    %c0_i32_0 = arith.constant 0 : i32
    %c0_i32_1 = arith.constant 0 : i32
    return %c0_i32, %c0_i32_0 : i32, i32
  }
  func.func @transform_4(%arg0: i32) -> (i32, i32) {
    %c0_i32 = arith.constant 0 : i32
    %c0_i32_0 = arith.constant 0 : i32
    %c0_i32_1 = arith.constant 0 : i32
    return %c0_i32, %c0_i32_0 : i32, i32
  }
  func.func @transform_5(%arg0: i32) -> (i32, i32) {
    %c0_i32 = arith.constant 0 : i32
    %c0_i32_0 = arith.constant 0 : i32
    %c0_i32_1 = arith.constant 0 : i32
    return %c0_i32, %c0_i32_0 : i32, i32
  }
  func.func @transform_6(%arg0: i32) -> (i32, i32) {
    %c0_i32 = arith.constant 0 : i32
    %c0_i32_0 = arith.constant 0 : i32
    %c0_i32_1 = arith.constant 0 : i32
    return %c0_i32, %c0_i32_0 : i32, i32
  }
  func.func @transform_7(%arg0: i32) -> (i32, i32) {
    %c0_i32 = arith.constant 0 : i32
    %c0_i32_0 = arith.constant 0 : i32
    %c0_i32_1 = arith.constant 0 : i32
    return %c0_i32, %c0_i32_0 : i32, i32
  }
  func.func @transform_8(%arg0: i32) -> (i32, i32) {
    %c0_i32 = arith.constant 0 : i32
    %c0_i32_0 = arith.constant 0 : i32
    %c0_i32_1 = arith.constant 0 : i32
    return %c0_i32, %c0_i32_0 : i32, i32
  }
  func.func @transform_9(%arg0: i32) -> (i32, i32, i32) {
    %c0_i32 = arith.constant 0 : i32
    %c0_i32_0 = arith.constant 0 : i32
    %c0_i32_1 = arith.constant 0 : i32
    return %arg0, %c0_i32, %c0_i32_0 : i32, i32, i32
  }
}

</mosaic_0001>

<llo_original>
// kernel: tpu_custom_call.1
$region0: #{tpu_custom_call.1}
  #allocation0 [shape = 'u32[]', space=smem, size = 0x4, offset = 0x4, fixed_abs, tag = 'smem constant byte address 0x4 - core index']
  #allocation1 [shape = 'u32[144,128]{1,0:T(1,128)}', space=vmem, size = 0x12000, scoped, tag = 'internal scratch']
  #allocation2 [shape = 'bf16[80,256]{1,0:T(16,128)(2,1)}', space=vmem, size = 0xa000, scoped, tag = 'scratch operand']
  %s0 = inlined_call_operand.hbm [shape: f32[2,8,1024], index: 0, kind: input, shape index: {}]
  %s1 = inlined_call_operand.hbm [shape: f32[1024,256], index: 1, kind: input, shape index: {}]
  %s2 = inlined_call_operand.vmem [shape: f32[4,256], index: 2, kind: input, shape index: {}]
  %s3 = inlined_call_operand.vmem [shape: bf16[16,8], index: 3, kind: input, shape index: {}]
  %s4 = inlined_call_operand.vmem [shape: f32[16,1], index: 4, kind: input, shape index: {}]
  %s5 = inlined_call_operand.vmem [shape: bf16[16,80], index: 5, kind: input, shape index: {}]
  %s6 = inlined_call_operand.vmem [shape: f32[16,1], index: 6, kind: input, shape index: {}]
  %s7 = inlined_call_operand.vmem [shape: bf16[8,16], index: 7, kind: input, shape index: {}]
  %s8 = inlined_call_operand.vmem [shape: f32[8,1], index: 8, kind: input, shape index: {}]
  %s9 = inlined_call_operand.hbm [shape: f32[2,8,256], index: 9, kind: output, shape index: {}]
  %s10 = sld [smem:[#allocation0]]
  $region77: #{tpu_custom_call.1} parent=0
    _
  %s12 = ssub.s32 1, %s10
  %s13 = scalar_select 0, %s12, %s10
  $region1: #{tpu_custom_call.1} parent=0
    #allocation3 [shape = 'u8[65536]{0}', space=vmem, size = 0x10000, scoped, tag = 'input window, operand 0']
    #allocation4 [shape = 's32[2]{0}', space=sflag, size = 0x8, scoped, tag = 'scoped memory for tpu_custom_call.1']
    #allocation5 [shape = 's32[2]{0}', space=sflag, size = 0x8, scoped, tag = 'scoped memory for tpu_custom_call.1']
    #allocation6 [shape = 'u8[1048576]{0}', space=vmem, size = 0x100000, scoped, tag = 'input window, operand 1, single buffered']
    #allocation7 [shape = 's32[1]{0}', space=sflag, size = 0x4, scoped, tag = 'scoped memory for tpu_custom_call.1']
    #allocation8 [shape = 'u8[16384]{0}', space=vmem, size = 0x4000, scoped, tag = 'output window, operand 0']
    %14 = vsyncpa [#allocation4], 0
    %s15 = scalar_lea.sflag [#allocation4], 1
    %16 = vsyncpa %s15, 0
    %17 = vsyncpa [#allocation7], 0
    %18 = vsyncpa [#allocation5], 0
    %s19 = scalar_lea.sflag [#allocation5], 1
    %20 = vsyncpa %s19, 0
    loop: start=0, step=1, limit=4
    $region2: #{tpu_custom_call.1} parent=1 // loop_pre_header
      _
    $region3: #{tpu_custom_call.1} parent=1 // loop_header
      %s22 = sphi 0, %s26
      %p23 = scmp.ge.s32.totalorder %s22, 4
      %s32 = sphi 0, %s34
      %s35 = sphi 0, %s32
      %s36 = sphi 0, %s35
      %s52 = sphi 0, %s36
      %s56 = sphi 0, %s56
      %s58 = sphi 0, %s56
      %s59 = sphi 0, %s58
      %s73 = sphi 0, %s59
      %s77 = sphi 0, %s77
      %s79 = sphi 0, %s77
      %s80 = sphi 0, %s79
      %s94 = sphi 0, %s80
      %s98 = sphi 0, %s98
      %s100 = sphi 0, %s98
      %s101 = sphi 0, %s100
      %s115 = sphi 0, %s101
      %s119 = sphi 0, %s119
      %s121 = sphi 0, %s119
      %s122 = sphi 0, %s121
      %s136 = sphi 0, %s122
      %s140 = sphi 0, %s140
      %s142 = sphi 0, %s140
      %s143 = sphi 0, %s142
      %s157 = sphi 0, %s143
      %s161 = sphi 0, %s161
      %s163 = sphi 0, %s161
      %s164 = sphi 0, %s163
      %s178 = sphi 0, %s164
      %s182 = sphi 0, %s182
      %s184 = sphi 0, %s182
      %s185 = sphi 0, %s184
      %s199 = sphi 0, %s185
      %s203 = sphi 0, %s203
      %s205 = sphi 0, %s203
      %s206 = sphi 0, %s205
      %s220 = sphi 0, %s206
      %s226 = sphi 0, %s228
      %s229 = sphi 0, %s226
      %s230 = sphi 0, %s229
      %s246 = sphi 0, %s230
    $region4: #{tpu_custom_call.1} parent=1 // loop_header_branch
      %25 = sbr.rel (%p23) target = $region8
    $region5: #{tpu_custom_call.1} parent=1 // loop_body
      %s27 = ssub.s32 %s22, 1
      %s28 = ssub.s32 %s22, 2
      %s29 = sadd.s32 %s22, 1
      %s30 = ssub.s32 %s22, %s29
      %p31 = scmp.eq.s32.totalorder %s30, 0
      %s33 = sadd.s32 %s32, 1
      %s34 = scalar_select %p31, %s32, %s33
      %p37 = pneg %p31
      %p38 = scmp.eq.s32.totalorder %s22, 1
      %p39 = por %p37, %p38
      %p40 = scmp.ne.s32.totalorder %s32, %s35
      %p41 = scmp.eq.s32.totalorder %s22, 0
      %p42 = por %p40, %p41
      %p43 = scmp.ne.s32.totalorder %s32, %s35
      %p44 = scmp.eq.s32.totalorder %s27, 1
      %p45 = por %p43, %p44
      %p46 = scmp.ne.s32.totalorder %s35, %s36
      %p47 = scmp.eq.s32.totalorder %s27, 0
      %p48 = por %p46, %p47
      %p49 = scmp.ne.s32.totalorder %s35, %s36
      %p50 = scmp.eq.s32.totalorder %s28, 1
      %p51 = por %p49, %p50
      %p53 = scmp.ne.s32.totalorder %s36, %s52
      %p54 = scmp.eq.s32.totalorder %s28, 0
      %p55 = por %p53, %p54
      %s57 = sadd.s32 %s56, 1
      %p60 = scmp.eq.s32.totalorder %s22, 1
      %p61 = scmp.ne.s32.totalorder %s56, %s58
      %p62 = scmp.eq.s32.totalorder %s22, 0
      %p63 = por %p61, %p62
      %p64 = scmp.ne.s32.totalorder %s56, %s58
      %p65 = scmp.eq.s32.totalorder %s27, 1
      %p66 = por %p64, %p65
      %p67 = scmp.ne.s32.totalorder %s58, %s59
      %p68 = scmp.eq.s32.totalorder %s27, 0
      %p69 = por %p67, %p68
      %p70 = scmp.ne.s32.totalorder %s58, %s59
      %p71 = scmp.eq.s32.totalorder %s28, 1
      %p72 = por %p70, %p71
      %p74 = scmp.ne.s32.totalorder %s59, %s73
      %p75 = scmp.eq.s32.totalorder %s28, 0
      %p76 = por %p74, %p75
      %s78 = sadd.s32 %s77, 1
      %p81 = scmp.eq.s32.totalorder %s22, 1
      %p82 = scmp.ne.s32.totalorder %s77, %s79
      %p83 = scmp.eq.s32.totalorder %s22, 0
      %p84 = por %p82, %p83
      %p85 = scmp.ne.s32.totalorder %s77, %s79
      %p86 = scmp.eq.s32.totalorder %s27, 1
      %p87 = por %p85, %p86
      %p88 = scmp.ne.s32.totalorder %s79, %s80
      %p89 = scmp.eq.s32.totalorder %s27, 0
      %p90 = por %p88, %p89
      %p91 = scmp.ne.s32.totalorder %s79, %s80
      %p92 = scmp.eq.s32.totalorder %s28, 1
      %p93 = por %p91, %p92
      %p95 = scmp.ne.s32.totalorder %s80, %s94
      %p96 = scmp.eq.s32.totalorder %s28, 0
      %p97 = por %p95, %p96
      %s99 = sadd.s32 %s98, 1
      %p102 = scmp.eq.s32.totalorder %s22, 1
      %p103 = scmp.ne.s32.totalorder %s98, %s100
      %p104 = scmp.eq.s32.totalorder %s22, 0
      %p105 = por %p103, %p104
      %p106 = scmp.ne.s32.totalorder %s98, %s100
      %p107 = scmp.eq.s32.totalorder %s27, 1
      %p108 = por %p106, %p107
      %p109 = scmp.ne.s32.totalorder %s100, %s101
      %p110 = scmp.eq.s32.totalorder %s27, 0
      %p111 = por %p109, %p110
      %p112 = scmp.ne.s32.totalorder %s100, %s101
      %p113 = scmp.eq.s32.totalorder %s28, 1
      %p114 = por %p112, %p113
      %p116 = scmp.ne.s32.totalorder %s101, %s115
      %p117 = scmp.eq.s32.totalorder %s28, 0
      %p118 = por %p116, %p117
      %s120 = sadd.s32 %s119, 1
      %p123 = scmp.eq.s32.totalorder %s22, 1
      %p124 = scmp.ne.s32.totalorder %s119, %s121
      %p125 = scmp.eq.s32.totalorder %s22, 0
      %p126 = por %p124, %p125
      %p127 = scmp.ne.s32.totalorder %s119, %s121
      %p128 = scmp.eq.s32.totalorder %s27, 1
      %p129 = por %p127, %p128
      %p130 = scmp.ne.s32.totalorder %s121, %s122
      %p131 = scmp.eq.s32.totalorder %s27, 0
      %p132 = por %p130, %p131
      %p133 = scmp.ne.s32.totalorder %s121, %s122
      %p134 = scmp.eq.s32.totalorder %s28, 1
      %p135 = por %p133, %p134
      %p137 = scmp.ne.s32.totalorder %s122, %s136
      %p138 = scmp.eq.s32.totalorder %s28, 0
      %p139 = por %p137, %p138
      %s141 = sadd.s32 %s140, 1
      %p144 = scmp.eq.s32.totalorder %s22, 1
      %p145 = scmp.ne.s32.totalorder %s140, %s142
      %p146 = scmp.eq.s32.totalorder %s22, 0
      %p147 = por %p145, %p146
      %p148 = scmp.ne.s32.totalorder %s140, %s142
      %p149 = scmp.eq.s32.totalorder %s27, 1
      %p150 = por %p148, %p149
      %p151 = scmp.ne.s32.totalorder %s142, %s143
      %p152 = scmp.eq.s32.totalorder %s27, 0
      %p153 = por %p151, %p152
      %p154 = scmp.ne.s32.totalorder %s142, %s143
      %p155 = scmp.eq.s32.totalorder %s28, 1
      %p156 = por %p154, %p155
      %p158 = scmp.ne.s32.totalorder %s143, %s157
      %p159 = scmp.eq.s32.totalorder %s28, 0
      %p160 = por %p158, %p159
      %s162 = sadd.s32 %s161, 1
      %p165 = scmp.eq.s32.totalorder %s22, 1
      %p166 = scmp.ne.s32.totalorder %s161, %s163
      %p167 = scmp.eq.s32.totalorder %s22, 0
      %p168 = por %p166, %p167
      %p169 = scmp.ne.s32.totalorder %s161, %s163
      %p170 = scmp.eq.s32.totalorder %s27, 1
      %p171 = por %p169, %p170
      %p172 = scmp.ne.s32.totalorder %s163, %s164
      %p173 = scmp.eq.s32.totalorder %s27, 0
      %p174 = por %p172, %p173
      %p175 = scmp.ne.s32.totalorder %s163, %s164
      %p176 = scmp.eq.s32.totalorder %s28, 1
      %p177 = por %p175, %p176
      %p179 = scmp.ne.s32.totalorder %s164, %s178
      %p180 = scmp.eq.s32.totalorder %s28, 0
      %p181 = por %p179, %p180
      %s183 = sadd.s32 %s182, 1
      %p186 = scmp.eq.s32.totalorder %s22, 1
      %p187 = scmp.ne.s32.totalorder %s182, %s184
      %p188 = scmp.eq.s32.totalorder %s22, 0
      %p189 = por %p187, %p188
      %p190 = scmp.ne.s32.totalorder %s182, %s184
      %p191 = scmp.eq.s32.totalorder %s27, 1
      %p192 = por %p190, %p191
      %p193 = scmp.ne.s32.totalorder %s184, %s185
      %p194 = scmp.eq.s32.totalorder %s27, 0
      %p195 = por %p193, %p194
      %p196 = scmp.ne.s32.totalorder %s184, %s185
      %p197 = scmp.eq.s32.totalorder %s28, 1
      %p198 = por %p196, %p197
      %p200 = scmp.ne.s32.totalorder %s185, %s199
      %p201 = scmp.eq.s32.totalorder %s28, 0
      %p202 = por %p200, %p201
      %s204 = sadd.s32 %s203, 1
      %p207 = scmp.eq.s32.totalorder %s22, 1
      %p208 = scmp.ne.s32.totalorder %s203, %s205
      %p209 = scmp.eq.s32.totalorder %s22, 0
      %p210 = por %p208, %p209
      %p211 = scmp.ne.s32.totalorder %s203, %s205
      %p212 = scmp.eq.s32.totalorder %s27, 1
      %p213 = por %p211, %p212
      %p214 = scmp.ne.s32.totalorder %s205, %s206
      %p215 = scmp.eq.s32.totalorder %s27, 0
      %p216 = por %p214, %p215
      %p217 = scmp.ne.s32.totalorder %s205, %s206
      %p218 = scmp.eq.s32.totalorder %s28, 1
      %p219 = por %p217, %p218
      %p221 = scmp.ne.s32.totalorder %s206, %s220
      %p222 = scmp.eq.s32.totalorder %s28, 0
      %p223 = por %p221, %p222
      %s224 = ssub.s32 %s22, %s29
      %p225 = scmp.eq.s32.totalorder %s224, 0
      %s227 = sadd.s32 %s226, 1
      %s228 = scalar_select %p225, %s226, %s227
      %p231 = pneg %p225
      %p232 = scmp.eq.s32.totalorder %s22, 1
      %p233 = por %p231, %p232
      %p234 = scmp.ne.s32.totalorder %s226, %s229
      %p235 = scmp.eq.s32.totalorder %s22, 0
      %p236 = por %p234, %p235
      %p237 = scmp.ne.s32.totalorder %s226, %s229
      %p238 = scmp.eq.s32.totalorder %s27, 1
      %p239 = por %p237, %p238
      %p240 = scmp.ne.s32.totalorder %s229, %s230
      %p241 = scmp.eq.s32.totalorder %s27, 0
      %p242 = por %p240, %p241
      %p243 = scmp.ne.s32.totalorder %s229, %s230
      %p244 = scmp.eq.s32.totalorder %s28, 1
      %p245 = por %p243, %p244
      %p247 = scmp.ne.s32.totalorder %s230, %s246
      %p248 = scmp.eq.s32.totalorder %s28, 0
      %p249 = por %p247, %p248
      %p250 = scmp.le.s32.totalorder 1, %s22
      %p251 = scmp.lt.s32.totalorder %s22, 3
      %p252 = pnand %p250, %p251
      %p253 = pneg %p252
      // Predicated region
      $region9: #{tpu_custom_call.1} parent=5 // pred_check
        _
      $region10: #{tpu_custom_call.1} parent=5 // pred_check_branch
        %255 = sbr.rel (%p252) target = $region12
      $region11: #{tpu_custom_call.1} parent=5 // pred_region
        %s256 = ssub.s32 %s22, 1
        // Predicated region
        $region13: #{tpu_custom_call.1} parent=11 // pred_check
          %p257 = pneg %p69
        $region14: #{tpu_custom_call.1} parent=11 // pred_check_branch
          %259 = sbr.rel (%p257) target = $region16
        $region15: #{tpu_custom_call.1} parent=11 // pred_region
          %s261 = ssub.s32 32768, 32768
          %262 = vsyncadd [#allocation7], %s261
          %s263 = sshll.u32 [#allocation6], 4
          %s264 = int_to_ptr.vmem [resolvable:$true] %s263
          %269 = dma.hbm_to_vmem [thread:$0]  %s1, 32768, %s264, [#allocation7], 256, 256, 16
        $region16: #{tpu_custom_call.1} parent=11 // pred_fallthru
          _
        // Predicated region
        $region17: #{tpu_custom_call.1} parent=11 // pred_check
          %p270 = pneg %p90
        $region18: #{tpu_custom_call.1} parent=11 // pred_check_branch
          %272 = sbr.rel (%p270) target = $region20
        $region19: #{tpu_custom_call.1} parent=11 // pred_region
          _
        $region20: #{tpu_custom_call.1} parent=11 // pred_fallthru
          _
        // Predicated region
        $region21: #{tpu_custom_call.1} parent=11 // pred_check
          %p273 = pneg %p111
        $region22: #{tpu_custom_call.1} parent=11 // pred_check_branch
          %275 = sbr.rel (%p273) target = $region24
        $region23: #{tpu_custom_call.1} parent=11 // pred_region
          _
        $region24: #{tpu_custom_call.1} parent=11 // pred_fallthru
          _
        // Predicated region
        $region25: #{tpu_custom_call.1} parent=11 // pred_check
          %p276 = pneg %p132
        $region26: #{tpu_custom_call.1} parent=11 // pred_check_branch
          %278 = sbr.rel (%p276) target = $region28
        $region27: #{tpu_custom_call.1} parent=11 // pred_region
          _
        $region28: #{tpu_custom_call.1} parent=11 // pred_fallthru
          _
        // Predicated region
        $region29: #{tpu_custom_call.1} parent=11 // pred_check
          %p279 = pneg %p153
        $region30: #{tpu_custom_call.1} parent=11 // pred_check_branch
          %281 = sbr.rel (%p279) target = $region32
        $region31: #{tpu_custom_call.1} parent=11 // pred_region
          _
        $region32: #{tpu_custom_call.1} parent=11 // pred_fallthru
          _
        // Predicated region
        $region33: #{tpu_custom_call.1} parent=11 // pred_check
          %p282 = pneg %p174
        $region34: #{tpu_custom_call.1} parent=11 // pred_check_branch
          %284 = sbr.rel (%p282) target = $region36
        $region35: #{tpu_custom_call.1} parent=11 // pred_region
          _
        $region36: #{tpu_custom_call.1} parent=11 // pred_fallthru
          _
        // Predicated region
        $region37: #{tpu_custom_call.1} parent=11 // pred_check
          %p285 = pneg %p195
        $region38: #{tpu_custom_call.1} parent=11 // pred_check_branch
          %287 = sbr.rel (%p285) target = $region40
        $region39: #{tpu_custom_call.1} parent=11 // pred_region
          _
        $region40: #{tpu_custom_call.1} parent=11 // pred_fallthru
          _
        // Predicated region
        $region41: #{tpu_custom_call.1} parent=11 // pred_check
          %p288 = pneg %p216
        $region42: #{tpu_custom_call.1} parent=11 // pred_check_branch
          %290 = sbr.rel (%p288) target = $region44
        $region43: #{tpu_custom_call.1} parent=11 // pred_region
          _
        $region44: #{tpu_custom_call.1} parent=11 // pred_fallthru
          _
      $region12: #{tpu_custom_call.1} parent=5 // pred_fallthru
        _
      %p291 = scmp.lt.s32.totalorder %s22, 2
      // Predicated region
      $region45: #{tpu_custom_call.1} parent=5 // pred_check
        %p292 = pneg %p291
      $region46: #{tpu_custom_call.1} parent=5 // pred_check_branch
        %294 = sbr.rel (%p292) target = $region48
      $region47: #{tpu_custom_call.1} parent=5 // pred_region
        // Predicated region
        $region49: #{tpu_custom_call.1} parent=47 // pred_check
          %p295 = pneg %p42
        $region50: #{tpu_custom_call.1} parent=47 // pred_check_branch
          %297 = sbr.rel (%p295) target = $region52
        $region51: #{tpu_custom_call.1} parent=47 // pred_region
          %s298 = sand.u32 %s32, 1
          %s299 = scalar_lea.sflag [#allocation4], %s298
          %s300 = sand.u32 %s32, 1
          %s301 = smul.addr %s300, 64
          %s302 = scalar_lea.vmem [#allocation3], %s301
          %s304 = ssub.s32 1024, 1024
          %305 = vsyncadd %s299, %s304
          %s306 = smul.addr %s22, 8
          %s307 = smul.addr %s306, 128
          %s308 = scalar_lea.hbm %s0, %s307
          %s310 = sshll.u32 %s302, 4
          %s311 = int_to_ptr.vmem [resolvable:$true] %s310
          %313 = dma.hbm_to_vmem [thread:$0]  %s308, 1024, %s311, %s299
        $region52: #{tpu_custom_call.1} parent=47 // pred_fallthru
          _
      $region48: #{tpu_custom_call.1} parent=5 // pred_fallthru
        _
      %p314 = scmp.le.s32.totalorder 1, %s22
      %p315 = scmp.lt.s32.totalorder %s22, 3
      %p316 = pnand %p314, %p315
      %p317 = pneg %p316
      // Predicated region
      $region53: #{tpu_custom_call.1} parent=5 // pred_check
        _
      $region54: #{tpu_custom_call.1} parent=5 // pred_check_branch
        %319 = sbr.rel (%p316) target = $region56
      $region55: #{tpu_custom_call.1} parent=5 // pred_region
        %s320 = ssub.s32 %s22, 1
        %s321 = sand.u32 %s35, 1
        %s322 = scalar_lea.sflag [#allocation4], %s321
        %s323 = sand.u32 %s35, 1
        %s324 = smul.addr %s323, 64
        %s325 = scalar_lea.vmem [#allocation3], %s324
        // Predicated region
        $region57: #{tpu_custom_call.1} parent=55 // pred_check
          %p326 = pneg %p48
        $region58: #{tpu_custom_call.1} parent=55 // pred_check_branch
          %328 = sbr.rel (%p326) target = $region60
        $region59: #{tpu_custom_call.1} parent=55 // pred_region
          %329 = dma.done %s322, 1024
        $region60: #{tpu_custom_call.1} parent=55 // pred_fallthru
          _
        // Predicated region
        $region61: #{tpu_custom_call.1} parent=55 // pred_check
          %p330 = pneg %p69
        $region62: #{tpu_custom_call.1} parent=55 // pred_check_branch
          %332 = sbr.rel (%p330) target = $region64
        $region63: #{tpu_custom_call.1} parent=55 // pred_region
          %333 = dma.done [#allocation7], 32768
        $region64: #{tpu_custom_call.1} parent=55 // pred_fallthru
          _
        %s334 = sand.u32 %s35, 1
        %s335 = scalar_lea.sflag [#allocation4], %s334
        %s336 = sand.u32 %s35, 1
        %s337 = smul.addr %s336, 64
        %s338 = scalar_lea.vmem [#allocation3], %s337
        %p339 = pneg %p48
        %p340 = pneg %p45
        %p341 = pneg %p69
        %p342 = pneg %p66
        %p343 = pneg %p90
        %p344 = pneg %p87
        %p345 = pneg %p111
        %p346 = pneg %p108
        %p347 = pneg %p132
        %p348 = pneg %p129
        %p349 = pneg %p153
        %p350 = pneg %p150
        %p351 = pneg %p174
        %p352 = pneg %p171
        %p353 = pneg %p195
        %p354 = pneg %p192
        %p355 = pneg %p216
        %p356 = pneg %p213
        %p357 = pneg %p242
        %p358 = pneg %p239
        %s359 = sand.u32 %s229, 1
        %s360 = scalar_lea.sflag [#allocation5], %s359
        %s361 = sand.u32 %s229, 1
        %s362 = smul.addr %s361, 16
        %s363 = scalar_lea.vmem [#allocation8], %s362
        %v365 = vld [vmem:[%s325] sm:$0xff]
        %v366 = vld [vmem:[%s325 + $0x8] sm:$0xff]
        %v367 = vld [vmem:[%s325 + $0x10] sm:$0xff]
        %v368 = vld [vmem:[%s325 + $0x18] sm:$0xff]
        %v369 = vld [vmem:[%s325 + $0x20] sm:$0xff]
        %v370 = vld [vmem:[%s325 + $0x28] sm:$0xff]
        %v371 = vld [vmem:[%s325 + $0x30] sm:$0xff]
        %v372 = vld [vmem:[%s325 + $0x38] sm:$0xff]
        %v373 = vld [vmem:[#allocation6] sm:$0xff]
        %v374 = vld [vmem:[#allocation6 + $0x8] sm:$0xff]
        %v375 = vld [vmem:[#allocation6 + $0x10] sm:$0xff]
        %v376 = vld [vmem:[#allocation6 + $0x18] sm:$0xff]
        %v377 = vld [vmem:[#allocation6 + $0x20] sm:$0xff]
        %v378 = vld [vmem:[#allocation6 + $0x28] sm:$0xff]
        %v379 = vld [vmem:[#allocation6 + $0x30] sm:$0xff]
        %v380 = vld [vmem:[#allocation6 + $0x38] sm:$0xff]
        %v381 = vld [vmem:[#allocation6 + $0x40] sm:$0xff]
        %v382 = vld [vmem:[#allocation6 + $0x48] sm:$0xff]
        %v383 = vld [vmem:[#allocation6 + $0x50] sm:$0xff]
        %v384 = vld [vmem:[#allocation6 + $0x58] sm:$0xff]
        %v385 = vld [vmem:[#allocation6 + $0x60] sm:$0xff]
        %v386 = vld [vmem:[#allocation6 + $0x68] sm:$0xff]
        %v387 = vld [vmem:[#allocation6 + $0x70] sm:$0xff]
        %v388 = vld [vmem:[#allocation6 + $0x78] sm:$0xff]
        %v389 = vld [vmem:[#allocation6 + $0x80] sm:$0xff]
        %v390 = vld [vmem:[#allocation6 + $0x88] sm:$0xff]
        %v391 = vld [vmem:[#allocation6 + $0x90] sm:$0xff]
        %v392 = vld [vmem:[#allocation6 + $0x98] sm:$0xff]
        %v393 = vld [vmem:[#allocation6 + $0xa0] sm:$0xff]
        %v394 = vld [vmem:[#allocation6 + $0xa8] sm:$0xff]
        %v395 = vld [vmem:[#allocation6 + $0xb0] sm:$0xff]
        %v396 = vld [vmem:[#allocation6 + $0xb8] sm:$0xff]
        %v397 = vld [vmem:[#allocation6 + $0xc0] sm:$0xff]
        %v398 = vld [vmem:[#allocation6 + $0xc8] sm:$0xff]
        %v399 = vld [vmem:[#allocation6 + $0xd0] sm:$0xff]
        %v400 = vld [vmem:[#allocation6 + $0xd8] sm:$0xff]
        %v401 = vld [vmem:[#allocation6 + $0xe0] sm:$0xff]
        %v402 = vld [vmem:[#allocation6 + $0xe8] sm:$0xff]
        %v403 = vld [vmem:[#allocation6 + $0xf0] sm:$0xff]
        %v404 = vld [vmem:[#allocation6 + $0xf8] sm:$0xff]
        %v405 = vld [vmem:[#allocation6 + $0x100] sm:$0xff]
        %v406 = vld [vmem:[#allocation6 + $0x108] sm:$0xff]
        %v407 = vld [vmem:[#allocation6 + $0x110] sm:$0xff]
        %v408 = vld [vmem:[#allocation6 + $0x118] sm:$0xff]
        %v409 = vld [vmem:[#allocation6 + $0x120] sm:$0xff]
        %v410 = vld [vmem:[#allocation6 + $0x128] sm:$0xff]
        %v411 = vld [vmem:[#allocation6 + $0x130] sm:$0xff]
        %v412 = vld [vmem:[#allocation6 + $0x138] sm:$0xff]
        %v413 = vld [vmem:[#allocation6 + $0x140] sm:$0xff]
        %v414 = vld [vmem:[#allocation6 + $0x148] sm:$0xff]
        %v415 = vld [vmem:[#allocation6 + $0x150] sm:$0xff]
        %v416 = vld [vmem:[#allocation6 + $0x158] sm:$0xff]
        %v417 = vld [vmem:[#allocation6 + $0x160] sm:$0xff]
        %v418 = vld [vmem:[#allocation6 + $0x168] sm:$0xff]
        %v419 = vld [vmem:[#allocation6 + $0x170] sm:$0xff]
        %v420 = vld [vmem:[#allocation6 + $0x178] sm:$0xff]
        %v421 = vld [vmem:[#allocation6 + $0x180] sm:$0xff]
        %v422 = vld [vmem:[#allocation6 + $0x188] sm:$0xff]
        %v423 = vld [vmem:[#allocation6 + $0x190] sm:$0xff]
        %v424 = vld [vmem:[#allocation6 + $0x198] sm:$0xff]
        %v425 = vld [vmem:[#allocation6 + $0x1a0] sm:$0xff]
        %v426 = vld [vmem:[#allocation6 + $0x1a8] sm:$0xff]
        %v427 = vld [vmem:[#allocation6 + $0x1b0] sm:$0xff]
        %v428 = vld [vmem:[#allocation6 + $0x1b8] sm:$0xff]
        %v429 = vld [vmem:[#allocation6 + $0x1c0] sm:$0xff]
        %v430 = vld [vmem:[#allocation6 + $0x1c8] sm:$0xff]
        %v431 = vld [vmem:[#allocation6 + $0x1d0] sm:$0xff]
        %v432 = vld [vmem:[#allocation6 + $0x1d8] sm:$0xff]
        %v433 = vld [vmem:[#allocation6 + $0x1e0] sm:$0xff]
        %v434 = vld [vmem:[#allocation6 + $0x1e8] sm:$0xff]
        %v435 = vld [vmem:[#allocation6 + $0x1f0] sm:$0xff]
        %v436 = vld [vmem:[#allocation6 + $0x1f8] sm:$0xff]
        %v437 = vld [vmem:[#allocation6 + $0x200] sm:$0xff]
        %v438 = vld [vmem:[#allocation6 + $0x208] sm:$0xff]
        %v439 = vld [vmem:[#allocation6 + $0x210] sm:$0xff]
        %v440 = vld [vmem:[#allocation6 + $0x218] sm:$0xff]
        %v441 = vld [vmem:[#allocation6 + $0x220] sm:$0xff]
        %v442 = vld [vmem:[#allocation6 + $0x228] sm:$0xff]
        %v443 = vld [vmem:[#allocation6 + $0x230] sm:$0xff]
        %v444 = vld [vmem:[#allocation6 + $0x238] sm:$0xff]
        %v445 = vld [vmem:[#allocation6 + $0x240] sm:$0xff]
        %v446 = vld [vmem:[#allocation6 + $0x248] sm:$0xff]
        %v447 = vld [vmem:[#allocation6 + $0x250] sm:$0xff]
        %v448 = vld [vmem:[#allocation6 + $0x258] sm:$0xff]
        %v449 = vld [vmem:[#allocation6 + $0x260] sm:$0xff]
        %v450 = vld [vmem:[#allocation6 + $0x268] sm:$0xff]
        %v451 = vld [vmem:[#allocation6 + $0x270] sm:$0xff]
        %v452 = vld [vmem:[#allocation6 + $0x278] sm:$0xff]
        %v453 = vld [vmem:[#allocation6 + $0x280] sm:$0xff]
        %v454 = vld [vmem:[#allocation6 + $0x288] sm:$0xff]
        %v455 = vld [vmem:[#allocation6 + $0x290] sm:$0xff]
        %v456 = vld [vmem:[#allocation6 + $0x298] sm:$0xff]
        %v457 = vld [vmem:[#allocation6 + $0x2a0] sm:$0xff]
        %v458 = vld [vmem:[#allocation6 + $0x2a8] sm:$0xff]
        %v459 = vld [vmem:[#allocation6 + $0x2b0] sm:$0xff]
        %v460 = vld [vmem:[#allocation6 + $0x2b8] sm:$0xff]
        %v461 = vld [vmem:[#allocation6 + $0x2c0] sm:$0xff]
        %v462 = vld [vmem:[#allocation6 + $0x2c8] sm:$0xff]
        %v463 = vld [vmem:[#allocation6 + $0x2d0] sm:$0xff]
        %v464 = vld [vmem:[#allocation6 + $0x2d8] sm:$0xff]
        %v465 = vld [vmem:[#allocation6 + $0x2e0] sm:$0xff]
        %v466 = vld [vmem:[#allocation6 + $0x2e8] sm:$0xff]
        %v467 = vld [vmem:[#allocation6 + $0x2f0] sm:$0xff]
        %v468 = vld [vmem:[#allocation6 + $0x2f8] sm:$0xff]
        %v469 = vld [vmem:[#allocation6 + $0x300] sm:$0xff]
        %v470 = vld [vmem:[#allocation6 + $0x308] sm:$0xff]
        %v471 = vld [vmem:[#allocation6 + $0x310] sm:$0xff]
        %v472 = vld [vmem:[#allocation6 + $0x318] sm:$0xff]
        %v473 = vld [vmem:[#allocation6 + $0x320] sm:$0xff]
        %v474 = vld [vmem:[#allocation6 + $0x328] sm:$0xff]
        %v475 = vld [vmem:[#allocation6 + $0x330] sm:$0xff]
        %v476 = vld [vmem:[#allocation6 + $0x338] sm:$0xff]
        %v477 = vld [vmem:[#allocation6 + $0x340] sm:$0xff]
        %v478 = vld [vmem:[#allocation6 + $0x348] sm:$0xff]
        %v479 = vld [vmem:[#allocation6 + $0x350] sm:$0xff]
        %v480 = vld [vmem:[#allocation6 + $0x358] sm:$0xff]
        %v481 = vld [vmem:[#allocation6 + $0x360] sm:$0xff]
        %v482 = vld [vmem:[#allocation6 + $0x368] sm:$0xff]
        %v483 = vld [vmem:[#allocation6 + $0x370] sm:$0xff]
        %v484 = vld [vmem:[#allocation6 + $0x378] sm:$0xff]
        %v485 = vld [vmem:[#allocation6 + $0x380] sm:$0xff]
        %v486 = vld [vmem:[#allocation6 + $0x388] sm:$0xff]
        %v487 = vld [vmem:[#allocation6 + $0x390] sm:$0xff]
        %v488 = vld [vmem:[#allocation6 + $0x398] sm:$0xff]
        %v489 = vld [vmem:[#allocation6 + $0x3a0] sm:$0xff]
        %v490 = vld [vmem:[#allocation6 + $0x3a8] sm:$0xff]
        %v491 = vld [vmem:[#allocation6 + $0x3b0] sm:$0xff]
        %v492 = vld [vmem:[#allocation6 + $0x3b8] sm:$0xff]
        %v493 = vld [vmem:[#allocation6 + $0x3c0] sm:$0xff]
        %v494 = vld [vmem:[#allocation6 + $0x3c8] sm:$0xff]
        %v495 = vld [vmem:[#allocation6 + $0x3d0] sm:$0xff]
        %v496 = vld [vmem:[#allocation6 + $0x3d8] sm:$0xff]
        %v497 = vld [vmem:[#allocation6 + $0x3e0] sm:$0xff]
        %v498 = vld [vmem:[#allocation6 + $0x3e8] sm:$0xff]
        %v499 = vld [vmem:[#allocation6 + $0x3f0] sm:$0xff]
        %v500 = vld [vmem:[#allocation6 + $0x3f8] sm:$0xff]
        %v501 = vld [vmem:[#allocation6 + $0x400] sm:$0xff]
        %v502 = vld [vmem:[#allocation6 + $0x408] sm:$0xff]
        %v503 = vld [vmem:[#allocation6 + $0x410] sm:$0xff]
        %v504 = vld [vmem:[#allocation6 + $0x418] sm:$0xff]
        %v505 = vld [vmem:[#allocation6 + $0x420] sm:$0xff]
        %v506 = vld [vmem:[#allocation6 + $0x428] sm:$0xff]
        %v507 = vld [vmem:[#allocation6 + $0x430] sm:$0xff]
        %v508 = vld [vmem:[#allocation6 + $0x438] sm:$0xff]
        %v509 = vld [vmem:[#allocation6 + $0x440] sm:$0xff]
        %v510 = vld [vmem:[#allocation6 + $0x448] sm:$0xff]
        %v511 = vld [vmem:[#allocation6 + $0x450] sm:$0xff]
        %v512 = vld [vmem:[#allocation6 + $0x458] sm:$0xff]
        %v513 = vld [vmem:[#allocation6 + $0x460] sm:$0xff]
        %v514 = vld [vmem:[#allocation6 + $0x468] sm:$0xff]
        %v515 = vld [vmem:[#allocation6 + $0x470] sm:$0xff]
        %v516 = vld [vmem:[#allocation6 + $0x478] sm:$0xff]
        %v517 = vld [vmem:[#allocation6 + $0x480] sm:$0xff]
        %v518 = vld [vmem:[#allocation6 + $0x488] sm:$0xff]
        %v519 = vld [vmem:[#allocation6 + $0x490] sm:$0xff]
        %v520 = vld [vmem:[#allocation6 + $0x498] sm:$0xff]
        %v521 = vld [vmem:[#allocation6 + $0x4a0] sm:$0xff]
        %v522 = vld [vmem:[#allocation6 + $0x4a8] sm:$0xff]
        %v523 = vld [vmem:[#allocation6 + $0x4b0] sm:$0xff]
        %v524 = vld [vmem:[#allocation6 + $0x4b8] sm:$0xff]
        %v525 = vld [vmem:[#allocation6 + $0x4c0] sm:$0xff]
        %v526 = vld [vmem:[#allocation6 + $0x4c8] sm:$0xff]
        %v527 = vld [vmem:[#allocation6 + $0x4d0] sm:$0xff]
        %v528 = vld [vmem:[#allocation6 + $0x4d8] sm:$0xff]
        %v529 = vld [vmem:[#allocation6 + $0x4e0] sm:$0xff]
        %v530 = vld [vmem:[#allocation6 + $0x4e8] sm:$0xff]
        %v531 = vld [vmem:[#allocation6 + $0x4f0] sm:$0xff]
        %v532 = vld [vmem:[#allocation6 + $0x4f8] sm:$0xff]
        %v533 = vld [vmem:[#allocation6 + $0x500] sm:$0xff]
        %v534 = vld [vmem:[#allocation6 + $0x508] sm:$0xff]
        %v535 = vld [vmem:[#allocation6 + $0x510] sm:$0xff]
        %v536 = vld [vmem:[#allocation6 + $0x518] sm:$0xff]
        %v537 = vld [vmem:[#allocation6 + $0x520] sm:$0xff]
        %v538 = vld [vmem:[#allocation6 + $0x528] sm:$0xff]
        %v539 = vld [vmem:[#allocation6 + $0x530] sm:$0xff]
        %v540 = vld [vmem:[#allocation6 + $0x538] sm:$0xff]
        %v541 = vld [vmem:[#allocation6 + $0x540] sm:$0xff]
        %v542 = vld [vmem:[#allocation6 + $0x548] sm:$0xff]
        %v543 = vld [vmem:[#allocation6 + $0x550] sm:$0xff]
        %v544 = vld [vmem:[#allocation6 + $0x558] sm:$0xff]
        %v545 = vld [vmem:[#allocation6 + $0x560] sm:$0xff]
        %v546 = vld [vmem:[#allocation6 + $0x568] sm:$0xff]
        %v547 = vld [vmem:[#allocation6 + $0x570] sm:$0xff]
        %v548 = vld [vmem:[#allocation6 + $0x578] sm:$0xff]
        %v549 = vld [vmem:[#allocation6 + $0x580] sm:$0xff]
        %v550 = vld [vmem:[#allocation6 + $0x588] sm:$0xff]
        %v551 = vld [vmem:[#allocation6 + $0x590] sm:$0xff]
        %v552 = vld [vmem:[#allocation6 + $0x598] sm:$0xff]
        %v553 = vld [vmem:[#allocation6 + $0x5a0] sm:$0xff]
        %v554 = vld [vmem:[#allocation6 + $0x5a8] sm:$0xff]
        %v555 = vld [vmem:[#allocation6 + $0x5b0] sm:$0xff]
        %v556 = vld [vmem:[#allocation6 + $0x5b8] sm:$0xff]
        %v557 = vld [vmem:[#allocation6 + $0x5c0] sm:$0xff]
        %v558 = vld [vmem:[#allocation6 + $0x5c8] sm:$0xff]
        %v559 = vld [vmem:[#allocation6 + $0x5d0] sm:$0xff]
        %v560 = vld [vmem:[#allocation6 + $0x5d8] sm:$0xff]
        %v561 = vld [vmem:[#allocation6 + $0x5e0] sm:$0xff]
        %v562 = vld [vmem:[#allocation6 + $0x5e8] sm:$0xff]
        %v563 = vld [vmem:[#allocation6 + $0x5f0] sm:$0xff]
        %v564 = vld [vmem:[#allocation6 + $0x5f8] sm:$0xff]
        %v565 = vld [vmem:[#allocation6 + $0x600] sm:$0xff]
        %v566 = vld [vmem:[#allocation6 + $0x608] sm:$0xff]
        %v567 = vld [vmem:[#allocation6 + $0x610] sm:$0xff]
        %v568 = vld [vmem:[#allocation6 + $0x618] sm:$0xff]
        %v569 = vld [vmem:[#allocation6 + $0x620] sm:$0xff]
        %v570 = vld [vmem:[#allocation6 + $0x628] sm:$0xff]
        %v571 = vld [vmem:[#allocation6 + $0x630] sm:$0xff]
        %v572 = vld [vmem:[#allocation6 + $0x638] sm:$0xff]
        %v573 = vld [vmem:[#allocation6 + $0x640] sm:$0xff]
        %v574 = vld [vmem:[#allocation6 + $0x648] sm:$0xff]
        %v575 = vld [vmem:[#allocation6 + $0x650] sm:$0xff]
        %v576 = vld [vmem:[#allocation6 + $0x658] sm:$0xff]
        %v577 = vld [vmem:[#allocation6 + $0x660] sm:$0xff]
        %v578 = vld [vmem:[#allocation6 + $0x668] sm:$0xff]
        %v579 = vld [vmem:[#allocation6 + $0x670] sm:$0xff]
        %v580 = vld [vmem:[#allocation6 + $0x678] sm:$0xff]
        %v581 = vld [vmem:[#allocation6 + $0x680] sm:$0xff]
        %v582 = vld [vmem:[#allocation6 + $0x688] sm:$0xff]
        %v583 = vld [vmem:[#allocation6 + $0x690] sm:$0xff]
        %v584 = vld [vmem:[#allocation6 + $0x698] sm:$0xff]
        %v585 = vld [vmem:[#allocation6 + $0x6a0] sm:$0xff]
        %v586 = vld [vmem:[#allocation6 + $0x6a8] sm:$0xff]
        %v587 = vld [vmem:[#allocation6 + $0x6b0] sm:$0xff]
        %v588 = vld [vmem:[#allocation6 + $0x6b8] sm:$0xff]
        %v589 = vld [vmem:[#allocation6 + $0x6c0] sm:$0xff]
        %v590 = vld [vmem:[#allocation6 + $0x6c8] sm:$0xff]
        %v591 = vld [vmem:[#allocation6 + $0x6d0] sm:$0xff]
        %v592 = vld [vmem:[#allocation6 + $0x6d8] sm:$0xff]
        %v593 = vld [vmem:[#allocation6 + $0x6e0] sm:$0xff]
        %v594 = vld [vmem:[#allocation6 + $0x6e8] sm:$0xff]
        %v595 = vld [vmem:[#allocation6 + $0x6f0] sm:$0xff]
        %v596 = vld [vmem:[#allocation6 + $0x6f8] sm:$0xff]
        %v597 = vld [vmem:[#allocation6 + $0x700] sm:$0xff]
        %v598 = vld [vmem:[#allocation6 + $0x708] sm:$0xff]
        %v599 = vld [vmem:[#allocation6 + $0x710] sm:$0xff]
        %v600 = vld [vmem:[#allocation6 + $0x718] sm:$0xff]
        %v601 = vld [vmem:[#allocation6 + $0x720] sm:$0xff]
        %v602 = vld [vmem:[#allocation6 + $0x728] sm:$0xff]
        %v603 = vld [vmem:[#allocation6 + $0x730] sm:$0xff]
        %v604 = vld [vmem:[#allocation6 + $0x738] sm:$0xff]
        %v605 = vld [vmem:[#allocation6 + $0x740] sm:$0xff]
        %v606 = vld [vmem:[#allocation6 + $0x748] sm:$0xff]
        %v607 = vld [vmem:[#allocation6 + $0x750] sm:$0xff]
        %v608 = vld [vmem:[#allocation6 + $0x758] sm:$0xff]
        %v609 = vld [vmem:[#allocation6 + $0x760] sm:$0xff]
        %v610 = vld [vmem:[#allocation6 + $0x768] sm:$0xff]
        %v611 = vld [vmem:[#allocation6 + $0x770] sm:$0xff]
        %v612 = vld [vmem:[#allocation6 + $0x778] sm:$0xff]
        %v613 = vld [vmem:[#allocation6 + $0x780] sm:$0xff]
        %v614 = vld [vmem:[#allocation6 + $0x788] sm:$0xff]
        %v615 = vld [vmem:[#allocation6 + $0x790] sm:$0xff]
        %v616 = vld [vmem:[#allocation6 + $0x798] sm:$0xff]
        %v617 = vld [vmem:[#allocation6 + $0x7a0] sm:$0xff]
        %v618 = vld [vmem:[#allocation6 + $0x7a8] sm:$0xff]
        %v619 = vld [vmem:[#allocation6 + $0x7b0] sm:$0xff]
        %v620 = vld [vmem:[#allocation6 + $0x7b8] sm:$0xff]
        %v621 = vld [vmem:[#allocation6 + $0x7c0] sm:$0xff]
        %v622 = vld [vmem:[#allocation6 + $0x7c8] sm:$0xff]
        %v623 = vld [vmem:[#allocation6 + $0x7d0] sm:$0xff]
        %v624 = vld [vmem:[#allocation6 + $0x7d8] sm:$0xff]
        %v625 = vld [vmem:[#allocation6 + $0x7e0] sm:$0xff]
        %v626 = vld [vmem:[#allocation6 + $0x7e8] sm:$0xff]
        %v627 = vld [vmem:[#allocation6 + $0x7f0] sm:$0xff]
        %v628 = vld [vmem:[#allocation6 + $0x7f8] sm:$0xff]
        %629 = vmatprep.subr.mxu0 %v374
        %630 = vmatpush1.msra.mxu0 %v373
        %631 = vmatprep.subr.mxu0 %v376
        %632 = vmatpush1.msra.mxu0 %v375
        %633 = vmatprep.subr.mxu0 %v378
        %634 = vmatpush1.msra.mxu0 %v377
        %635 = vmatprep.subr.mxu0 %v380
        %636 = vmatpush1.msra.mxu0 %v379
        %637 = vmatprep.subr.mxu0 %v382
        %638 = vmatpush1.msra.mxu0 %v381
        %639 = vmatprep.subr.mxu0 %v384
        %640 = vmatpush1.msra.mxu0 %v383
        %641 = vmatprep.subr.mxu0 %v386
        %642 = vmatpush1.msra.mxu0 %v385
        %643 = vmatprep.subr.mxu0 %v388
        %644 = vmatpush1.msra.mxu0 %v387
        %645 = vmatprep.subr.mxu0 %v390
        %646 = vmatpush1.msra.mxu0 %v389
        %647 = vmatprep.subr.mxu0 %v392
        %648 = vmatpush1.msra.mxu0 %v391
        %649 = vmatprep.subr.mxu0 %v394
        %650 = vmatpush1.msra.mxu0 %v393
        %651 = vmatprep.subr.mxu0 %v396
        %652 = vmatpush1.msra.mxu0 %v395
        %653 = vmatprep.subr.mxu0 %v398
        %654 = vmatpush1.msra.mxu0 %v397
        %655 = vmatprep.subr.mxu0 %v400
        %656 = vmatpush1.msra.mxu0 %v399
        %657 = vmatprep.subr.mxu0 %v402
        %658 = vmatpush1.msra.mxu0 %v401
        %659 = vmatprep.subr.mxu0 %v404
        %660 = vmatpush1.msra.mxu0 %v403
        %661 = vmatprep.subr.mxu0 %v406
        %662 = vmatpush1.msra.mxu0 %v405
        %663 = vmatprep.subr.mxu0 %v408
        %664 = vmatpush1.msra.mxu0 %v407
        %665 = vmatprep.subr.mxu0 %v410
        %666 = vmatpush1.msra.mxu0 %v409
        %667 = vmatprep.subr.mxu0 %v412
        %668 = vmatpush1.msra.mxu0 %v411
        %669 = vmatprep.subr.mxu0 %v414
        %670 = vmatpush1.msra.mxu0 %v413
        %671 = vmatprep.subr.mxu0 %v416
        %672 = vmatpush1.msra.mxu0 %v415
        %673 = vmatprep.subr.mxu0 %v418
        %674 = vmatpush1.msra.mxu0 %v417
        %675 = vmatprep.subr.mxu0 %v420
        %676 = vmatpush1.msra.mxu0 %v419
        %677 = vmatprep.subr.mxu0 %v422
        %678 = vmatpush1.msra.mxu0 %v421
        %679 = vmatprep.subr.mxu0 %v424
        %680 = vmatpush1.msra.mxu0 %v423
        %681 = vmatprep.subr.mxu0 %v426
        %682 = vmatpush1.msra.mxu0 %v425
        %683 = vmatprep.subr.mxu0 %v428
        %684 = vmatpush1.msra.mxu0 %v427
        %685 = vmatprep.subr.mxu0 %v430
        %686 = vmatpush1.msra.mxu0 %v429
        %687 = vmatprep.subr.mxu0 %v432
        %688 = vmatpush1.msra.mxu0 %v431
        %689 = vmatprep.subr.mxu0 %v434
        %690 = vmatpush1.msra.mxu0 %v433
        %691 = vmatprep.subr.mxu0 %v436
        %692 = vmatpush1.msra.mxu0 %v435
        %693 = vmatprep.mubr.f32.mxu0 %v366
        %694 = vmatmul.mubr.f32.gmra.mrb[0].mxu0 %v365
        %v695 = vpop.f32.mrb[0].mxu0
        %v696 = vadd.f32 0.0, %v695
        %v697 = vpop.f32.mrb[0].mxu0
        %v698 = vadd.f32 0.0, %v697
        %699 = vdwg.mxu0
        %700 = vmatprep.subr.mxu0 %v438
        %701 = vmatpush1.msra.mxu0 %v437
        %702 = vmatprep.subr.mxu0 %v440
        %703 = vmatpush1.msra.mxu0 %v439
        %704 = vmatprep.subr.mxu0 %v442
        %705 = vmatpush1.msra.mxu0 %v441
        %706 = vmatprep.subr.mxu0 %v444
        %707 = vmatpush1.msra.mxu0 %v443
        %708 = vmatprep.subr.mxu0 %v446
        %709 = vmatpush1.msra.mxu0 %v445
        %710 = vmatprep.subr.mxu0 %v448
        %711 = vmatpush1.msra.mxu0 %v447
        %712 = vmatprep.subr.mxu0 %v450
        %713 = vmatpush1.msra.mxu0 %v449
        %714 = vmatprep.subr.mxu0 %v452
        %715 = vmatpush1.msra.mxu0 %v451
        %716 = vmatprep.subr.mxu0 %v454
        %717 = vmatpush1.msra.mxu0 %v453
        %718 = vmatprep.subr.mxu0 %v456
        %719 = vmatpush1.msra.mxu0 %v455
        %720 = vmatprep.subr.mxu0 %v458
        %721 = vmatpush1.msra.mxu0 %v457
        %722 = vmatprep.subr.mxu0 %v460
        %723 = vmatpush1.msra.mxu0 %v459
        %724 = vmatprep.subr.mxu0 %v462
        %725 = vmatpush1.msra.mxu0 %v461
        %726 = vmatprep.subr.mxu0 %v464
        %727 = vmatpush1.msra.mxu0 %v463
        %728 = vmatprep.subr.mxu0 %v466
        %729 = vmatpush1.msra.mxu0 %v465
        %730 = vmatprep.subr.mxu0 %v468
        %731 = vmatpush1.msra.mxu0 %v467
        %732 = vmatprep.subr.mxu0 %v470
        %733 = vmatpush1.msra.mxu0 %v469
        %734 = vmatprep.subr.mxu0 %v472
        %735 = vmatpush1.msra.mxu0 %v471
        %736 = vmatprep.subr.mxu0 %v474
        %737 = vmatpush1.msra.mxu0 %v473
        %738 = vmatprep.subr.mxu0 %v476
        %739 = vmatpush1.msra.mxu0 %v475
        %740 = vmatprep.subr.mxu0 %v478
        %741 = vmatpush1.msra.mxu0 %v477
        %742 = vmatprep.subr.mxu0 %v480
        %743 = vmatpush1.msra.mxu0 %v479
        %744 = vmatprep.subr.mxu0 %v482
        %745 = vmatpush1.msra.mxu0 %v481
        %746 = vmatprep.subr.mxu0 %v484
        %747 = vmatpush1.msra.mxu0 %v483
        %748 = vmatprep.subr.mxu0 %v486
        %749 = vmatpush1.msra.mxu0 %v485
        %750 = vmatprep.subr.mxu0 %v488
        %751 = vmatpush1.msra.mxu0 %v487
        %752 = vmatprep.subr.mxu0 %v490
        %753 = vmatpush1.msra.mxu0 %v489
        %754 = vmatprep.subr.mxu0 %v492
        %755 = vmatpush1.msra.mxu0 %v491
        %756 = vmatprep.subr.mxu0 %v494
        %757 = vmatpush1.msra.mxu0 %v493
        %758 = vmatprep.subr.mxu0 %v496
        %759 = vmatpush1.msra.mxu0 %v495
        %760 = vmatprep.subr.mxu0 %v498
        %761 = vmatpush1.msra.mxu0 %v497
        %762 = vmatprep.subr.mxu0 %v500
        %763 = vmatpush1.msra.mxu0 %v499
        %764 = vmatprep.mubr.f32.mxu0 %v368
        %765 = vmatmul.mubr.f32.gmra.mrb[0].mxu0 %v367
        %v766 = vpop.f32.mrb[0].mxu0
        %v767 = vadd.f32 %v696, %v766
        %v768 = vpop.f32.mrb[0].mxu0
        %v769 = vadd.f32 %v698, %v768
        %770 = vdwg.mxu0
        %771 = vmatprep.subr.mxu0 %v502
        %772 = vmatpush1.msra.mxu0 %v501
        %773 = vmatprep.subr.mxu0 %v504
        %774 = vmatpush1.msra.mxu0 %v503
        %775 = vmatprep.subr.mxu0 %v506
        %776 = vmatpush1.msra.mxu0 %v505
        %777 = vmatprep.subr.mxu0 %v508
        %778 = vmatpush1.msra.mxu0 %v507
        %779 = vmatprep.subr.mxu0 %v510
        %780 = vmatpush1.msra.mxu0 %v509
        %781 = vmatprep.subr.mxu0 %v512
        %782 = vmatpush1.msra.mxu0 %v511
        %783 = vmatprep.subr.mxu0 %v514
        %784 = vmatpush1.msra.mxu0 %v513
        %785 = vmatprep.subr.mxu0 %v516
        %786 = vmatpush1.msra.mxu0 %v515
        %787 = vmatprep.subr.mxu0 %v518
        %788 = vmatpush1.msra.mxu0 %v517
        %789 = vmatprep.subr.mxu0 %v520
        %790 = vmatpush1.msra.mxu0 %v519
        %791 = vmatprep.subr.mxu0 %v522
        %792 = vmatpush1.msra.mxu0 %v521
        %793 = vmatprep.subr.mxu0 %v524
        %794 = vmatpush1.msra.mxu0 %v523
        %795 = vmatprep.subr.mxu0 %v526
        %796 = vmatpush1.msra.mxu0 %v525
        %797 = vmatprep.subr.mxu0 %v528
        %798 = vmatpush1.msra.mxu0 %v527
        %799 = vmatprep.subr.mxu0 %v530
        %800 = vmatpush1.msra.mxu0 %v529
        %801 = vmatprep.subr.mxu0 %v532
        %802 = vmatpush1.msra.mxu0 %v531
        %803 = vmatprep.subr.mxu0 %v534
        %804 = vmatpush1.msra.mxu0 %v533
        %805 = vmatprep.subr.mxu0 %v536
        %806 = vmatpush1.msra.mxu0 %v535
        %807 = vmatprep.subr.mxu0 %v538
        %808 = vmatpush1.msra.mxu0 %v537
        %809 = vmatprep.subr.mxu0 %v540
        %810 = vmatpush1.msra.mxu0 %v539
        %811 = vmatprep.subr.mxu0 %v542
        %812 = vmatpush1.msra.mxu0 %v541
        %813 = vmatprep.subr.mxu0 %v544
        %814 = vmatpush1.msra.mxu0 %v543
        %815 = vmatprep.subr.mxu0 %v546
        %816 = vmatpush1.msra.mxu0 %v545
        %817 = vmatprep.subr.mxu0 %v548
        %818 = vmatpush1.msra.mxu0 %v547
        %819 = vmatprep.subr.mxu0 %v550
        %820 = vmatpush1.msra.mxu0 %v549
        %821 = vmatprep.subr.mxu0 %v552
        %822 = vmatpush1.msra.mxu0 %v551
        %823 = vmatprep.subr.mxu0 %v554
        %824 = vmatpush1.msra.mxu0 %v553
        %825 = vmatprep.subr.mxu0 %v556
        %826 = vmatpush1.msra.mxu0 %v555
        %827 = vmatprep.subr.mxu0 %v558
        %828 = vmatpush1.msra.mxu0 %v557
        %829 = vmatprep.subr.mxu0 %v560
        %830 = vmatpush1.msra.mxu0 %v559
        %831 = vmatprep.subr.mxu0 %v562
        %832 = vmatpush1.msra.mxu0 %v561
        %833 = vmatprep.subr.mxu0 %v564
        %834 = vmatpush1.msra.mxu0 %v563
        %835 = vmatprep.mubr.f32.mxu0 %v370
        %836 = vmatmul.mubr.f32.gmra.mrb[0].mxu0 %v369
        %v837 = vpop.f32.mrb[0].mxu0
        %v838 = vadd.f32 %v767, %v837
        %v839 = vpop.f32.mrb[0].mxu0
        %v840 = vadd.f32 %v769, %v839
        %841 = vdwg.mxu0
        %842 = vmatprep.subr.mxu0 %v566
        %843 = vmatpush1.msra.mxu0 %v565
        %844 = vmatprep.subr.mxu0 %v568
        %845 = vmatpush1.msra.mxu0 %v567
        %846 = vmatprep.subr.mxu0 %v570
        %847 = vmatpush1.msra.mxu0 %v569
        %848 = vmatprep.subr.mxu0 %v572
        %849 = vmatpush1.msra.mxu0 %v571
        %850 = vmatprep.subr.mxu0 %v574
        %851 = vmatpush1.msra.mxu0 %v573
        %852 = vmatprep.subr.mxu0 %v576
        %853 = vmatpush1.msra.mxu0 %v575
        %854 = vmatprep.subr.mxu0 %v578
        %855 = vmatpush1.msra.mxu0 %v577
        %856 = vmatprep.subr.mxu0 %v580
        %857 = vmatpush1.msra.mxu0 %v579
        %858 = vmatprep.subr.mxu0 %v582
        %859 = vmatpush1.msra.mxu0 %v581
        %860 = vmatprep.subr.mxu0 %v584
        %861 = vmatpush1.msra.mxu0 %v583
        %862 = vmatprep.subr.mxu0 %v586
        %863 = vmatpush1.msra.mxu0 %v585
        %864 = vmatprep.subr.mxu0 %v588
        %865 = vmatpush1.msra.mxu0 %v587
        %866 = vmatprep.subr.mxu0 %v590
        %867 = vmatpush1.msra.mxu0 %v589
        %868 = vmatprep.subr.mxu0 %v592
        %869 = vmatpush1.msra.mxu0 %v591
        %870 = vmatprep.subr.mxu0 %v594
        %871 = vmatpush1.msra.mxu0 %v593
        %872 = vmatprep.subr.mxu0 %v596
        %873 = vmatpush1.msra.mxu0 %v595
        %874 = vmatprep.subr.mxu0 %v598
        %875 = vmatpush1.msra.mxu0 %v597
        %876 = vmatprep.subr.mxu0 %v600
        %877 = vmatpush1.msra.mxu0 %v599
        %878 = vmatprep.subr.mxu0 %v602
        %879 = vmatpush1.msra.mxu0 %v601
        %880 = vmatprep.subr.mxu0 %v604
        %881 = vmatpush1.msra.mxu0 %v603
        %882 = vmatprep.subr.mxu0 %v606
        %883 = vmatpush1.msra.mxu0 %v605
        %884 = vmatprep.subr.mxu0 %v608
        %885 = vmatpush1.msra.mxu0 %v607
        %886 = vmatprep.subr.mxu0 %v610
        %887 = vmatpush1.msra.mxu0 %v609
        %888 = vmatprep.subr.mxu0 %v612
        %889 = vmatpush1.msra.mxu0 %v611
        %890 = vmatprep.subr.mxu0 %v614
        %891 = vmatpush1.msra.mxu0 %v613
        %892 = vmatprep.subr.mxu0 %v616
        %893 = vmatpush1.msra.mxu0 %v615
        %894 = vmatprep.subr.mxu0 %v618
        %895 = vmatpush1.msra.mxu0 %v617
        %896 = vmatprep.subr.mxu0 %v620
        %897 = vmatpush1.msra.mxu0 %v619
        %898 = vmatprep.subr.mxu0 %v622
        %899 = vmatpush1.msra.mxu0 %v621
        %900 = vmatprep.subr.mxu0 %v624
        %901 = vmatpush1.msra.mxu0 %v623
        %902 = vmatprep.subr.mxu0 %v626
        %903 = vmatpush1.msra.mxu0 %v625
        %904 = vmatprep.subr.mxu0 %v628
        %905 = vmatpush1.msra.mxu0 %v627
        %906 = vmatprep.mubr.f32.mxu0 %v372
        %907 = vmatmul.mubr.f32.gmra.mrb[0].mxu0 %v371
        %v908 = vpop.f32.mrb[0].mxu0
        %v909 = vadd.f32 %v838, %v908
        %v910 = vpop.f32.mrb[0].mxu0
        %v911 = vadd.f32 %v840, %v910
        %912 = vdwg.mxu0
        %v913 = vld [vmem:[%s3] sm:$0xf]
        %v914 = vld [vmem:[%s3 + $0x4] sm:$0xf]
        %v915 = vpack.c.bf16 %v909, %v909
        %v916 = vpack.c.bf16 %v911, %v911
        %v917 = vld [vmem:[%s4] sm:$0xff]
        %v918 = vld [vmem:[%s4 + $0x8] sm:$0xff]
        %920 = vset.pattern.permute.xlu0 0
        %921 = vperm.xlu0 %920, %v917
        %v922 = vpop.permute.xlu0 %921
        %925 = vset.pattern.permute.xlu0 0
        %926 = vperm.xlu0 %925, %v918
        %v927 = vpop.permute.xlu0 %926
        %v931 = vunpack.c.l.b16 %v913
        %v932 = vunpack.c.l.b16 %v914
        %v933 = vpack.c.b16 %v932, %v931
        %vm934 = vcmask 64512
        %v936 = vsel %vm934, %v933, 0
        %vm938 = vcmask 1043456
        %v940 = vsel %vm938, %v915, 0
        %v943 = vsel %vm938, %v916, 0
        %945 = vmatprep.subr.bf16.mxu0 %v943
        %946 = vmatpush1.bf16.msra.mxu0 %v940
        %947 = vmatprep.subr.bf16.mxu0 0
        %948 = vmatpush1.bf16.msra.mxu0 0
        %949 = vmatprep.subr.bf16.mxu0 0
        %950 = vmatpush1.bf16.msra.mxu0 0
        %951 = vmatprep.subr.bf16.mxu0 0
        %952 = vmatpush1.bf16.msra.mxu0 0
        %953 = vmatprep.subr.bf16.mxu0 0
        %954 = vmatpush1.bf16.msra.mxu0 0
        %955 = vmatprep.subr.bf16.mxu0 0
        %956 = vmatpush1.bf16.msra.mxu0 0
        %957 = vmatprep.subr.bf16.mxu0 0
        %958 = vmatpush1.bf16.msra.mxu0 0
        %959 = vmatprep.subr.bf16.mxu0 0
        %960 = vmatpush1.bf16.msra.mxu0 0
        %961 = vmatprep.subr.bf16.mxu0 0
        %962 = vmatpush1.bf16.msra.mxu0 0
        %963 = vmatprep.subr.bf16.mxu0 0
        %964 = vmatpush1.bf16.msra.mxu0 0
        %965 = vmatprep.subr.bf16.mxu0 0
        %966 = vmatpush1.bf16.msra.mxu0 0
        %967 = vmatprep.subr.bf16.mxu0 0
        %968 = vmatpush1.bf16.msra.mxu0 0
        %969 = vmatprep.subr.bf16.mxu0 0
        %970 = vmatpush1.bf16.msra.mxu0 0
        %971 = vmatprep.subr.bf16.mxu0 0
        %972 = vmatpush1.bf16.msra.mxu0 0
        %973 = vmatprep.subr.bf16.mxu0 0
        %974 = vmatpush1.bf16.msra.mxu0 0
        %975 = vmatprep.subr.bf16.mxu0 0
        %976 = vmatpush1.bf16.msra.mxu0 0
        %977 = vmatprep.mubr.bf16.mxu0 0
        %978 = vmatmul.mubr.bf16.gmra.mrb[0].mxu0 %v936
        %v979 = vpop.f32.mrb[0].mxu0
        %v980 = vadd.f32 %v922, %v979
        %v981 = vpop.f32.mrb[0].mxu0
        %v982 = vadd.f32 %v922, %v981
        %v983 = vpop.f32.mrb[0].mxu0
        %v984 = vadd.f32 %v927, %v983
        %v985 = vpop.f32.mrb[0].mxu0
        %v986 = vadd.f32 %v927, %v985
        %987 = vdwg.mxu0
        %v988 = vmax.f32 %v980, 0.0
        %v989 = vmax.f32 %v982, 0.0
        %v990 = vmax.f32 %v984, 0.0
        %v991 = vmax.f32 %v986, 0.0
        %v992 = vmin.f32 %v988, 6.0
        %v993 = vmin.f32 %v989, 6.0
        %v994 = vmin.f32 %v990, 6.0
        %v995 = vmin.f32 %v991, 6.0
        %v996 = vld [vmem:[%s2] sm:$0xff]
        %v997 = vpack.c.bf16 %v994, %v992
        %v998 = vpack.c.bf16 %v995, %v993
        %999 = vst [vmem:[#allocation2] sm:$0xff] %v997
        %1000 = vst [vmem:[#allocation2 + $0x8] sm:$0xff] %v998
        %1001 = vrot.lane.b32.xlu0 %v992, 1
        %v1002 = vpop.permute.xlu0 %1001
        %1003 = vrot.lane.b32.xlu0 %v994, 1
        %v1004 = vpop.permute.xlu0 %1003
        %1005 = vrot.lane.b32.xlu0 %v993, 1
        %v1006 = vpop.permute.xlu0 %1005
        %1007 = vrot.lane.b32.xlu0 %v995, 1
        %v1008 = vpop.permute.xlu0 %1007
        %v1009 = vlaneseq
        %v1010 = vand.u32 %v1009, 127
        %vm1011 = vcmp.lt.s32.totalorder %v1010, 1
        %v1012 = vsel %vm1011, %v1002, %v1006
        %v1013 = vsel %vm1011, %v1004, %v1008
        %v1014 = vsel %vm1011, %v1006, %v1002
        %v1015 = vsel %vm1011, %v1008, %v1004
        %v1017 = vlaneseq
        %v1018 = vshrl.u32 %v1017, 7
        %v1019 = vsub.s32 0, %v1018
        %v1020 = vrot.slane %v996, %v1019
        %v1021 = vlaneseq
        %v1022 = vshrl.u32 %v1021, 7
        %v1023 = vsub.s32 4, %v1022
        %v1024 = vrot.slane %v996, %v1023
        %v1027 = vlaneseq
        %v1028 = vshrl.u32 %v1027, 7
        %v1029 = vsub.s32 0, %v1028
        %v1030 = vrot.slane %v1020, %v1029
        %v1031 = vlaneseq
        %v1032 = vshrl.u32 %v1031, 7
        %v1033 = vsub.s32 0, %v1032
        %v1034 = vrot.slane %v1024, %v1033
        %v1035 = vmul.f32 %v1014, %v1030
        %v1036 = vmul.f32 %v1012, %v1034
        %v1037 = vmul.f32 %v1015, %v1030
        %v1038 = vmul.f32 %v1013, %v1034
        %v1039 = vpack.c.bf16 %v1037, %v1035
        %v1040 = vpack.c.bf16 %v1038, %v1036
        %1041 = vst [vmem:[#allocation2 + $0x10] sm:$0xff] %v1039
        %1042 = vst [vmem:[#allocation2 + $0x18] sm:$0xff] %v1040
        %1043 = vrot.lane.b32.xlu0 %v992, 127
        %v1044 = vpop.permute.xlu0 %1043
        %1045 = vrot.lane.b32.xlu0 %v994, 127
        %v1046 = vpop.permute.xlu0 %1045
        %1047 = vrot.lane.b32.xlu0 %v993, 127
        %v1048 = vpop.permute.xlu0 %1047
        %1049 = vrot.lane.b32.xlu0 %v995, 127
        %v1050 = vpop.permute.xlu0 %1049
        %vm1051 = vcmp.lt.s32.totalorder %v1010, 127
        %v1052 = vsel %vm1051, %v1044, %v1048
        %v1053 = vsel %vm1051, %v1046, %v1050
        %v1054 = vsel %vm1051, %v1048, %v1044
        %v1055 = vsel %vm1051, %v1050, %v1046
        %v1056 = vlaneseq
        %v1057 = vshrl.u32 %v1056, 7
        %v1058 = vsub.s32 1, %v1057
        %v1059 = vrot.slane %v996, %v1058
        %v1060 = vlaneseq
        %v1061 = vshrl.u32 %v1060, 7
        %v1062 = vsub.s32 5, %v1061
        %v1063 = vrot.slane %v996, %v1062
        %v1066 = vlaneseq
        %v1067 = vshrl.u32 %v1066, 7
        %v1068 = vsub.s32 1, %v1067
        %v1069 = vrot.slane %v1059, %v1068
        %v1070 = vlaneseq
        %v1071 = vshrl.u32 %v1070, 7
        %v1072 = vsub.s32 1, %v1071
        %v1073 = vrot.slane %v1063, %v1072
        %v1074 = vmul.f32 %v1052, %v1069
        %v1075 = vmul.f32 %v1054, %v1073
        %v1076 = vmul.f32 %v1053, %v1069
        %v1077 = vmul.f32 %v1055, %v1073
        %v1078 = vpack.c.bf16 %v1076, %v1074
        %v1079 = vpack.c.bf16 %v1077, %v1075
        %1080 = vst [vmem:[#allocation2 + $0x20] sm:$0xff] %v1078
        %1081 = vst [vmem:[#allocation2 + $0x28] sm:$0xff] %v1079
        %1082 = vrot.lane.b32.xlu0 %v992, 8
        %v1083 = vpop.permute.xlu0 %1082
        %1084 = vrot.lane.b32.xlu0 %v994, 8
        %v1085 = vpop.permute.xlu0 %1084
        %1086 = vrot.lane.b32.xlu0 %v993, 8
        %v1087 = vpop.permute.xlu0 %1086
        %1088 = vrot.lane.b32.xlu0 %v995, 8
        %v1089 = vpop.permute.xlu0 %1088
        %vm1090 = vcmp.lt.s32.totalorder %v1010, 8
        %v1091 = vsel %vm1090, %v1083, %v1087
        %v1092 = vsel %vm1090, %v1085, %v1089
        %v1093 = vsel %vm1090, %v1087, %v1083
        %v1094 = vsel %vm1090, %v1089, %v1085
        %v1095 = vlaneseq
        %v1096 = vshrl.u32 %v1095, 7
        %v1097 = vsub.s32 2, %v1096
        %v1098 = vrot.slane %v996, %v1097
        %v1099 = vlaneseq
        %v1100 = vshrl.u32 %v1099, 7
        %v1101 = vsub.s32 6, %v1100
        %v1102 = vrot.slane %v996, %v1101
        %v1105 = vlaneseq
        %v1106 = vshrl.u32 %v1105, 7
        %v1107 = vsub.s32 2, %v1106
        %v1108 = vrot.slane %v1098, %v1107
        %v1109 = vlaneseq
        %v1110 = vshrl.u32 %v1109, 7
        %v1111 = vsub.s32 2, %v1110
        %v1112 = vrot.slane %v1102, %v1111
        %v1113 = vmul.f32 %v1093, %v1108
        %v1114 = vmul.f32 %v1091, %v1112
        %v1115 = vmul.f32 %v1094, %v1108
        %v1116 = vmul.f32 %v1092, %v1112
        %v1117 = vpack.c.bf16 %v1115, %v1113
        %v1118 = vpack.c.bf16 %v1116, %v1114
        %1119 = vst [vmem:[#allocation2 + $0x30] sm:$0xff] %v1117
        %1120 = vst [vmem:[#allocation2 + $0x38] sm:$0xff] %v1118
        %1121 = vrot.lane.b32.xlu0 %v992, 120
        %v1122 = vpop.permute.xlu0 %1121
        %1123 = vrot.lane.b32.xlu0 %v994, 120
        %v1124 = vpop.permute.xlu0 %1123
        %1125 = vrot.lane.b32.xlu0 %v993, 120
        %v1126 = vpop.permute.xlu0 %1125
        %1127 = vrot.lane.b32.xlu0 %v995, 120
        %v1128 = vpop.permute.xlu0 %1127
        %vm1129 = vcmp.lt.s32.totalorder %v1010, 120
        %v1130 = vsel %vm1129, %v1122, %v1126
        %v1131 = vsel %vm1129, %v1124, %v1128
        %v1132 = vsel %vm1129, %v1126, %v1122
        %v1133 = vsel %vm1129, %v1128, %v1124
        %v1134 = vlaneseq
        %v1135 = vshrl.u32 %v1134, 7
        %v1136 = vsub.s32 3, %v1135
        %v1137 = vrot.slane %v996, %v1136
        %v1138 = vlaneseq
        %v1139 = vshrl.u32 %v1138, 7
        %v1140 = vsub.s32 7, %v1139
        %v1141 = vrot.slane %v996, %v1140
        %v1144 = vlaneseq
        %v1145 = vshrl.u32 %v1144, 7
        %v1146 = vsub.s32 3, %v1145
        %v1147 = vrot.slane %v1137, %v1146
        %v1148 = vlaneseq
        %v1149 = vshrl.u32 %v1148, 7
        %v1150 = vsub.s32 3, %v1149
        %v1151 = vrot.slane %v1141, %v1150
        %v1152 = vmul.f32 %v1130, %v1147
        %v1153 = vmul.f32 %v1132, %v1151
        %v1154 = vmul.f32 %v1131, %v1147
        %v1155 = vmul.f32 %v1133, %v1151
        %v1156 = vpack.c.bf16 %v1154, %v1152
        %v1157 = vpack.c.bf16 %v1155, %v1153
        %1158 = vst [vmem:[#allocation2 + $0x40] sm:$0xff] %v1156
        %1159 = vst [vmem:[#allocation2 + $0x48] sm:$0xff] %v1157
        %v1160 = vld [vmem:[%s5] sm:$0xf]
        %v1161 = vld [vmem:[%s5 + $0x4] sm:$0xf]
        %v1162 = vld [vmem:[#allocation2] sm:$0xff]
        %v1163 = vld [vmem:[#allocation2 + $0x8] sm:$0xff]
        %v1164 = vld [vmem:[#allocation2 + $0x10] sm:$0xff]
        %v1165 = vld [vmem:[#allocation2 + $0x18] sm:$0xff]
        %v1166 = vld [vmem:[#allocation2 + $0x20] sm:$0xff]
        %v1167 = vld [vmem:[#allocation2 + $0x28] sm:$0xff]
        %v1168 = vld [vmem:[#allocation2 + $0x30] sm:$0xff]
        %v1169 = vld [vmem:[#allocation2 + $0x38] sm:$0xff]
        %v1170 = vld [vmem:[#allocation2 + $0x40] sm:$0xff]
        %v1171 = vld [vmem:[#allocation2 + $0x48] sm:$0xff]
        %v1172 = vld [vmem:[%s6] sm:$0xff]
        %v1173 = vld [vmem:[%s6 + $0x8] sm:$0xff]
        %1175 = vset.pattern.permute.xlu0 0
        %1176 = vperm.xlu0 %1175, %v1172
        %v1177 = vpop.permute.xlu0 %1176
        %1180 = vset.pattern.permute.xlu0 0
        %1181 = vperm.xlu0 %1180, %v1173
        %v1182 = vpop.permute.xlu0 %1181
        %v1186 = vunpack.c.l.b16 %v1160
        %v1187 = vunpack.c.l.b16 %v1161
        %v1188 = vpack.c.b16 %v1187, %v1186
        %vm1189 = vcmask 654336
        %v1191 = vsel %vm1189, %v1188, 0
        %1193 = vmatprep.subr.bf16.mxu0 %v1163
        %1194 = vmatpush1.bf16.msra.mxu0 %v1162
        %1195 = vmatprep.subr.bf16.mxu0 %v1165
        %1196 = vmatpush1.bf16.msra.mxu0 %v1164
        %1197 = vmatprep.subr.bf16.mxu0 %v1167
        %1198 = vmatpush1.bf16.msra.mxu0 %v1166
        %1199 = vmatprep.subr.bf16.mxu0 %v1169
        %1200 = vmatpush1.bf16.msra.mxu0 %v1168
        %1201 = vmatprep.subr.bf16.mxu0 %v1171
        %1202 = vmatpush1.bf16.msra.mxu0 %v1170
        %1203 = vmatprep.subr.bf16.mxu0 0
        %1204 = vmatpush1.bf16.msra.mxu0 0
        %1205 = vmatprep.subr.bf16.mxu0 0
        %1206 = vmatpush1.bf16.msra.mxu0 0
        %1207 = vmatprep.subr.bf16.mxu0 0
        %1208 = vmatpush1.bf16.msra.mxu0 0
        %1209 = vmatprep.subr.bf16.mxu0 0
        %1210 = vmatpush1.bf16.msra.mxu0 0
        %1211 = vmatprep.subr.bf16.mxu0 0
        %1212 = vmatpush1.bf16.msra.mxu0 0
        %1213 = vmatprep.subr.bf16.mxu0 0
        %1214 = vmatpush1.bf16.msra.mxu0 0
        %1215 = vmatprep.subr.bf16.mxu0 0
        %1216 = vmatpush1.bf16.msra.mxu0 0
        %1217 = vmatprep.subr.bf16.mxu0 0
        %1218 = vmatpush1.bf16.msra.mxu0 0
        %1219 = vmatprep.subr.bf16.mxu0 0
        %1220 = vmatpush1.bf16.msra.mxu0 0
        %1221 = vmatprep.subr.bf16.mxu0 0
        %1222 = vmatpush1.bf16.msra.mxu0 0
        %1223 = vmatprep.subr.bf16.mxu0 0
        %1224 = vmatpush1.bf16.msra.mxu0 0
        %1225 = vmatprep.mubr.bf16.mxu0 0
        %1226 = vmatmul.mubr.bf16.gmra.mrb[0].mxu0 %v1191
        %v1227 = vpop.f32.mrb[0].mxu0
        %v1228 = vadd.f32 %v1177, %v1227
        %v1229 = vpop.f32.mrb[0].mxu0
        %v1230 = vadd.f32 %v1177, %v1229
        %v1231 = vpop.f32.mrb[0].mxu0
        %v1232 = vadd.f32 %v1182, %v1231
        %v1233 = vpop.f32.mrb[0].mxu0
        %v1234 = vadd.f32 %v1182, %v1233
        %1235 = vdwg.mxu0
        %v1236 = vmax.f32 %v1228, 0.0
        %v1237 = vmax.f32 %v1230, 0.0
        %v1238 = vmax.f32 %v1232, 0.0
        %v1239 = vmax.f32 %v1234, 0.0
        %v1240 = vmin.f32 %v1236, 6.0
        %v1241 = vmin.f32 %v1237, 6.0
        %v1242 = vmin.f32 %v1238, 6.0
        %v1243 = vmin.f32 %v1239, 6.0
        %v1244 = vld [vmem:[%s7] sm:$0xf]
        %v1245 = vpack.c.bf16 %v1242, %v1240
        %v1246 = vpack.c.bf16 %v1243, %v1241
        %v1247 = vld [vmem:[%s8] sm:$0xff]
        %1249 = vset.pattern.permute.xlu0 0
        %1250 = vperm.xlu0 %1249, %v1247
        %v1251 = vpop.permute.xlu0 %1250
        %vm1253 = vcmask 130048
        %v1255 = vsel %vm1253, %v1244, 0
        %1257 = vmatprep.subr.bf16.mxu0 %v1246
        %1258 = vmatpush1.bf16.msra.mxu0 %v1245
        %1259 = vmatprep.subr.bf16.mxu0 0
        %1260 = vmatpush1.bf16.msra.mxu0 0
        %1261 = vmatprep.subr.bf16.mxu0 0
        %1262 = vmatpush1.bf16.msra.mxu0 0
        %1263 = vmatprep.subr.bf16.mxu0 0
        %1264 = vmatpush1.bf16.msra.mxu0 0
        %1265 = vmatprep.subr.bf16.mxu0 0
        %1266 = vmatpush1.bf16.msra.mxu0 0
        %1267 = vmatprep.subr.bf16.mxu0 0
        %1268 = vmatpush1.bf16.msra.mxu0 0
        %1269 = vmatprep.subr.bf16.mxu0 0
        %1270 = vmatpush1.bf16.msra.mxu0 0
        %1271 = vmatprep.subr.bf16.mxu0 0
        %1272 = vmatpush1.bf16.msra.mxu0 0
        %1273 = vmatprep.subr.bf16.mxu0 0
        %1274 = vmatpush1.bf16.msra.mxu0 0
        %1275 = vmatprep.subr.bf16.mxu0 0
        %1276 = vmatpush1.bf16.msra.mxu0 0
        %1277 = vmatprep.subr.bf16.mxu0 0
        %1278 = vmatpush1.bf16.msra.mxu0 0
        %1279 = vmatprep.subr.bf16.mxu0 0
        %1280 = vmatpush1.bf16.msra.mxu0 0
        %1281 = vmatprep.subr.bf16.mxu0 0
        %1282 = vmatpush1.bf16.msra.mxu0 0
        %1283 = vmatprep.subr.bf16.mxu0 0
        %1284 = vmatpush1.bf16.msra.mxu0 0
        %1285 = vmatprep.subr.bf16.mxu0 0
        %1286 = vmatpush1.bf16.msra.mxu0 0
        %1287 = vmatprep.subr.bf16.mxu0 0
        %1288 = vmatpush1.bf16.msra.mxu0 0
        %1289 = vmatprep.mubr.bf16.mxu0 0
        %1290 = vmatmul.mubr.bf16.gmra.mrb[0].mxu0 %v1255
        %v1291 = vpop.f32.mrb[0].mxu0
        %v1292 = vadd.f32 %v1251, %v1291
        %v1293 = vpop.f32.mrb[0].mxu0
        %v1294 = vadd.f32 %v1251, %v1293
        %v1295 = vpop.f32.mrb[0].mxu0
        %v1296 = vpop.f32.mrb[0].mxu0
        %1297 = vdwg.mxu0
        %v1298 = vadd.f32 %v1292, %v909
        %v1299 = vadd.f32 %v1294, %v911
        %1300 = vst [vmem:[%s363] sm:$0xff] %v1298
        %1301 = vst [vmem:[%s363 + $0x8] sm:$0xff] %v1299
        %s1302 = sand.u32 %s229, 1
        %s1303 = scalar_lea.sflag [#allocation5], %s1302
        %s1304 = sand.u32 %s229, 1
        %s1305 = smul.addr %s1304, 16
        %s1306 = scalar_lea.vmem [#allocation8], %s1305
        // Predicated region
        $region65: #{tpu_custom_call.1} parent=55 // pred_check
          %p1307 = pneg %p239
        $region66: #{tpu_custom_call.1} parent=55 // pred_check_branch
          %1309 = sbr.rel (%p1307) target = $region68
        $region67: #{tpu_custom_call.1} parent=55 // pred_region
          %s1311 = ssub.s32 256, 256
          %1312 = vsyncadd %s1303, %s1311
          %s1313 = smul.addr %s27, 2
          %s1314 = smul.addr %s1313, 128
          %s1315 = scalar_lea.hbm %s9, %s1314
          %s1317 = sshll.u32 %s1306, 4
          %s1318 = int_to_ptr.vmem [resolvable:$true] %s1317
          %1320 = dma.vmem_to_hbm [thread:$0]  %s1318, 256, %s1315, %s1303
        $region68: #{tpu_custom_call.1} parent=55 // pred_fallthru
          _
      $region56: #{tpu_custom_call.1} parent=5 // pred_fallthru
        _
      %p1321 = scmp.le.s32.totalorder 2, %s22
      // Predicated region
      $region69: #{tpu_custom_call.1} parent=5 // pred_check
        %p1322 = pneg %p1321
      $region70: #{tpu_custom_call.1} parent=5 // pred_check_branch
        %1324 = sbr.rel (%p1322) target = $region72
      $region71: #{tpu_custom_call.1} parent=5 // pred_region
        %s1325 = ssub.s32 %s22, 2
        // Predicated region
        $region73: #{tpu_custom_call.1} parent=71 // pred_check
          %p1326 = pneg %p245
        $region74: #{tpu_custom_call.1} parent=71 // pred_check_branch
          %1328 = sbr.rel (%p1326) target = $region76
        $region75: #{tpu_custom_call.1} parent=71 // pred_region
          %s1329 = sand.u32 %s230, 1
          %s1330 = scalar_lea.sflag [#allocation5], %s1329
          %s1331 = sand.u32 %s230, 1
          %s1332 = smul.addr %s1331, 16
          %s1333 = scalar_lea.vmem [#allocation8], %s1332
          %1334 = dma.done %s1330, 256
        $region76: #{tpu_custom_call.1} parent=71 // pred_fallthru
          _
      $region72: #{tpu_custom_call.1} parent=5 // pred_fallthru
        _
    $region6: #{tpu_custom_call.1} parent=1 // loop_footer
      %s26 = sadd.s32 1, %s22
    $region7: #{tpu_custom_call.1} parent=1 // loop_footer_branch
      %21 = sbr.rel target = $region3
    $region8: #{tpu_custom_call.1} parent=1 // loop_exit
      _
    %1335 = vsyncpa [#allocation4], 1
    %s1336 = scalar_lea.sflag [#allocation4], 1
    %1337 = vsyncpa %s1336, 1
    %1338 = vsyncpa [#allocation7], 1
    %1339 = vsyncpa [#allocation5], 1
    %s1340 = scalar_lea.sflag [#allocation5], 1
    %1341 = vsyncpa %s1340, 1

</llo_original>
